<compile_context>
chip_gen: v5e
topology: v5e:2x2
jax: 0.10.0
libtpu: 0.0.40
codegen_flags: <defaults>
</compile_context>

<pallas_src>
import functools
import math

import jax
import jax.numpy as jnp
from jax.experimental import pallas as pl
from jax.experimental.pallas import tpu as pltpu


# ----------------------------- kernel --------------------------------------


def _layernorm(x, g, b, eps):
    mu = jnp.mean(x, axis=-1, keepdims=True)
    var = jnp.mean(jnp.square(x - mu), axis=-1, keepdims=True)
    return (x - mu) * jax.lax.rsqrt(var + eps) * g + b


def decoder_layer_kernel(
    x_ref,
    wqkv_ref, bqkv_ref, wo_ref, bo_ref,
    ln1_g_ref, ln1_b_ref,
    w1_ref, b1_ref, w2_ref, b2_ref,
    ln2_g_ref, ln2_b_ref,
    fin_g_ref, fin_b_ref,
    o_ref,
    *, nhead, apply_final_norm, eps=1e-5,
):
    """One decoder layer (self-attn + FFN, post-norm) for one batch element.

    Weight layouts (prepared once host-side, see prepare_layer_params):
      wqkv: (E, 3E) bf16   columns = [Q heads | K heads | V heads],
                           1/sqrt(dh) folded into the Q columns.
      bqkv: (1, 3E) f32
      wo:   (E, E)  bf16   rows ordered head-major to match the lane concat.
      w1: (E, F) bf16, w2: (F, E) bf16; biases / LN params (1, ·) f32.
    """
    x_bf = x_ref[0]                                   # (S, E) bf16
    S, E = x_bf.shape
    dh = E // nhead

    # --- fused QKV projection: one lane-dense (S,E)@(E,3E) MXU matmul -------
    qkv = jnp.dot(x_bf, wqkv_ref[...],
                  preferred_element_type=jnp.float32) + bqkv_ref[...]  # (S,3E)
    qkv_bf = qkv.astype(jnp.bfloat16)

    # split into per-head (nhead, S, dh): static lane slices + leading-dim
    # stack (XLU relayout; the XLU slot is idle in this kernel).
    q3 = jnp.stack([qkv_bf[:,         h * dh:        (h + 1) * dh]
                    for h in range(nhead)], axis=0)
    k3 = jnp.stack([qkv_bf[:, E +     h * dh: E +     (h + 1) * dh]
                    for h in range(nhead)], axis=0)
    v3 = jnp.stack([qkv_bf[:, 2 * E + h * dh: 2 * E + (h + 1) * dh]
                    for h in range(nhead)], axis=0)

    # --- attention scores: all heads in one batched contraction -------------
    s = jnp.einsum('hqd,hkd->hqk', q3, k3,
                   preferred_element_type=jnp.float32)        # (nhead, S, S)

    # causal mask: single 2-D additive mask, broadcast over heads
    row = jax.lax.broadcasted_iota(jnp.int32, (S, S), 0)
    col = jax.lax.broadcasted_iota(jnp.int32, (S, S), 1)
    neg = jnp.where(col > row, jnp.float32(-1e9), jnp.float32(0.0))
    s = s + neg

    # --- softmax (f32; max-stabilized; reciprocal on the EUP slot) ----------
    s = s - jnp.max(s, axis=-1, keepdims=True)
    p = jnp.exp(s)
    p = p * pl.reciprocal(jnp.sum(p, axis=-1, keepdims=True), approx=True)

    # --- P @ V, batched over heads -------------------------------------------
    ctx = jnp.einsum('hqk,hkd->hqd', p.astype(jnp.bfloat16), v3,
                     preferred_element_type=jnp.float32)      # (nhead, S, dh)

    # --- output projection: regroup heads onto lanes, one (S,E)@(E,E) matmul.
    # Head reduction becomes the MXU K-reduction (free inside the systolic
    # array) instead of nhead-1 VPU adds.
    ctx_cat = jnp.concatenate([ctx[h] for h in range(nhead)], axis=-1)  # (S,E)
    attn = jnp.dot(ctx_cat.astype(jnp.bfloat16), wo_ref[...],
                   preferred_element_type=jnp.float32) + bo_ref[...]

    # --- residual + layernorm 1 (post-norm, PyTorch default), f32 -----------
    x_f32 = x_bf.astype(jnp.float32)
    y = _layernorm(x_f32 + attn, ln1_g_ref[...], ln1_b_ref[...], eps)

    # --- feed forward (ReLU), bf16 matmuls, f32 accumulate -------------------
    h1 = jnp.dot(y.astype(jnp.bfloat16), w1_ref[...],
                 preferred_element_type=jnp.float32) + b1_ref[...]
    h1 = jnp.maximum(h1, 0.0)
    ff = jnp.dot(h1.astype(jnp.bfloat16), w2_ref[...],
                 preferred_element_type=jnp.float32) + b2_ref[...]

    # --- residual + layernorm 2 ----------------------------------------------
    z = _layernorm(y + ff, ln2_g_ref[...], ln2_b_ref[...], eps)

    # --- fused final LayerNorm (last layer only; static flag) ---------------
    if apply_final_norm:
        z = _layernorm(z, fin_g_ref[...], fin_b_ref[...], eps)

    o_ref[0] = z.astype(o_ref.dtype)


# ----------------------------- wrappers ------------------------------------


def _full_spec(shape):
    nd = len(shape)
    return pl.BlockSpec(shape, lambda b, _nd=nd: (0,) * _nd)


def prepare_layer_params(p, nhead):
    """Host-side param prep (runs ONCE at setup): fused QKV, scale fold, bf16."""
    E = p["wq"].shape[0]
    dh = E // nhead
    scale = 1.0 / math.sqrt(dh)
    wqkv = jnp.concatenate([p["wq"] * scale, p["wk"], p["wv"]], axis=1)  # (E,3E)
    bqkv = jnp.concatenate([p["bq"] * scale, p["bk"], p["bv"]], axis=1)  # (1,3E)
    return {
        "wqkv": wqkv.astype(jnp.bfloat16),
        "bqkv": bqkv.astype(jnp.float32),
        "wo": p["wo"].astype(jnp.bfloat16), "bo": p["bo"],
        "ln1_g": p["ln1_g"], "ln1_b": p["ln1_b"],
        "w1": p["w1"].astype(jnp.bfloat16), "b1": p["b1"],
        "w2": p["w2"].astype(jnp.bfloat16), "b2": p["b2"],
        "ln2_g": p["ln2_g"], "ln2_b": p["ln2_b"],
    }


def prepare_decoder_params(layer_params, nhead):
    return [prepare_layer_params(p, nhead) for p in layer_params]


def run_decoder_layer(x, p, fin_g, fin_b, *, nhead, apply_final_norm, out_dtype):
    B, S, E = x.shape
    F = p["w1"].shape[1]

    in_specs = [
        pl.BlockSpec((1, S, E), lambda b: (b, 0, 0)),          # x (per-batch)
        _full_spec((E, 3 * E)), _full_spec((1, 3 * E)),        # wqkv, bqkv
        _full_spec((E, E)), _full_spec((1, E)),                # wo, bo
        _full_spec((1, E)), _full_spec((1, E)),                # ln1 g, b
        _full_spec((E, F)), _full_spec((1, F)),                # w1, b1
        _full_spec((F, E)), _full_spec((1, E)),                # w2, b2
        _full_spec((1, E)), _full_spec((1, E)),                # ln2 g, b
        _full_spec((1, E)), _full_spec((1, E)),                # final LN g, b
    ]

    kernel = functools.partial(decoder_layer_kernel, nhead=nhead,
                               apply_final_norm=apply_final_norm)
    return pl.pallas_call(
        kernel,
        out_shape=jax.ShapeDtypeStruct((B, S, E), out_dtype),
        grid_spec=pltpu.PrefetchScalarGridSpec(
            num_scalar_prefetch=0,
            grid=(B,),
            in_specs=in_specs,
            out_specs=pl.BlockSpec((1, S, E), lambda b: (b, 0, 0)),
        ),
        compiler_params=pltpu.CompilerParams(
            dimension_semantics=("parallel",),
            # Safe on all generations (v7x has 64 MiB physical VMEM).
            vmem_limit_bytes=48 * 1024 * 1024,
        ),
    )(
        x,
        p["wqkv"], p["bqkv"], p["wo"], p["bo"],
        p["ln1_g"], p["ln1_b"],
        p["w1"], p["b1"], p["w2"], p["b2"],
        p["ln2_g"], p["ln2_b"],
        fin_g, fin_b,
    )


def transformer_decoder_forward(tgt, prepped_layers, norm_params, nhead):
    """Mirrors TransformerDecoder.forward with a causal tgt_mask.

    The causal mask is generated inside the kernel; layers are iterated,
    per-layer aux loss is summed (0.0 for the dense layer), and the final
    LayerNorm (if any) is fused into the last layer's epilogue.
    `prepped_layers` must come from prepare_decoder_params (prep runs once).
    """
    B, S, E = tgt.shape
    out_dtype = tgt.dtype
    x = tgt.astype(jnp.bfloat16)            # bf16 activations into the MXU

    if norm_params is not None:
        fin_g, fin_b = norm_params["g"], norm_params["b"]
    else:
        fin_g = jnp.ones((1, E), jnp.float32)
        fin_b = jnp.zeros((1, E), jnp.float32)

    aux_loss = jnp.zeros((), jnp.float32)
    n = len(prepped_layers)
    for i, p in enumerate(prepped_layers):
        is_last = i == n - 1
        x = run_decoder_layer(
            x, p, fin_g, fin_b, nhead=nhead,
            apply_final_norm=is_last and (norm_params is not None),
            out_dtype=out_dtype if is_last else jnp.bfloat16,
        )
        aux_loss = aux_loss + jnp.float32(0.0)   # dense layer: no aux loss
    return x, aux_loss


# --------------------------- parameter init ---------------------------------


def _xavier_uniform(key, fan_in, fan_out, shape):
    limit = math.sqrt(6.0 / (fan_in + fan_out))
    return jax.random.uniform(key, shape, jnp.float32, -limit, limit)


def init_layer_params(key, d_model, nhead, dim_ff):
    ks = jax.random.split(key, 8)
    E, F = d_model, dim_ff
    return {
        # (in, out) convention: y = x @ W.  (PyTorch Linear is (out, in).)
        "wq": _xavier_uniform(ks[0], E, E, (E, E)),
        "wk": _xavier_uniform(ks[1], E, E, (E, E)),
        "wv": _xavier_uniform(ks[2], E, E, (E, E)),
        "bq": jnp.zeros((1, E), jnp.float32),
        "bk": jnp.zeros((1, E), jnp.float32),
        "bv": jnp.zeros((1, E), jnp.float32),
        "wo": _xavier_uniform(ks[3], E, E, (E, E)),
        "bo": jnp.zeros((1, E), jnp.float32),
        "ln1_g": jnp.ones((1, E), jnp.float32),
        "ln1_b": jnp.zeros((1, E), jnp.float32),
        "w1": _xavier_uniform(ks[4], E, F, (E, F)),
        "b1": jnp.zeros((1, F), jnp.float32),
        "w2": _xavier_uniform(ks[5], F, E, (F, E)),
        "b2": jnp.zeros((1, E), jnp.float32),
        "ln2_g": jnp.ones((1, E), jnp.float32),
        "ln2_b": jnp.zeros((1, E), jnp.float32),
    }


# --------------------------- pure-JAX reference ------------------------------


def _ref_layernorm(x, g, b, eps=1e-5):
    mu = jnp.mean(x, axis=-1, keepdims=True)
    var = jnp.mean(jnp.square(x - mu), axis=-1, keepdims=True)
    return (x - mu) * jax.lax.rsqrt(var + eps) * g + b


def reference_forward(tgt, layer_params, norm_params, nhead):
    """Precision-matched pure-JAX reference (bf16 matmul operands, f32 math)."""
    B, S, E = tgt.shape
    dh = E // nhead
    bf = jnp.bfloat16

    def mm(a, w):
        return jnp.dot(a.astype(bf), w.astype(bf),
                       preferred_element_type=jnp.float32)

    mask = jnp.triu(jnp.ones((S, S), bool), 1)
    x = tgt.astype(bf).astype(jnp.float32)
    n = len(layer_params)
    for i, p in enumerate(layer_params):
        q = mm(x, p["wq"]) + p["bq"]
        k = mm(x, p["wk"]) + p["bk"]
        v = mm(x, p["wv"]) + p["bv"]

        def heads(t):
            return t.reshape(B, S, nhead, dh).transpose(0, 2, 1, 3)

        qh, kh, vh = heads(q), heads(k), heads(v)
        s = jnp.einsum('bhqd,bhkd->bhqk', qh.astype(bf), kh.astype(bf),
                       preferred_element_type=jnp.float32) / math.sqrt(dh)
        s = jnp.where(mask, -1e9, s)
        pr = jax.nn.softmax(s, axis=-1)
        ctx = jnp.einsum('bhqk,bhkd->bhqd', pr.astype(bf), vh.astype(bf),
                         preferred_element_type=jnp.float32)
        ctx = ctx.transpose(0, 2, 1, 3).reshape(B, S, E)
        attn = mm(ctx, p["wo"]) + p["bo"]
        y = _ref_layernorm(x + attn, p["ln1_g"], p["ln1_b"])
        h1 = jnp.maximum(mm(y, p["w1"]) + p["b1"], 0.0)
        ff = mm(h1, p["w2"]) + p["b2"]
        x = _ref_layernorm(y + ff, p["ln2_g"], p["ln2_b"])
        if i < n - 1:
            x = x.astype(bf).astype(jnp.float32)
    if norm_params is not None:
        x = _ref_layernorm(x, norm_params["g"], norm_params["b"])
    return x


# -------------------------------- main ---------------------------------------


if __name__ == "__main__":
    # Small but lane-dense shapes: E, F multiples of 128; S multiple of 8.
    B, S, E, NHEAD, FF, NUM_LAYERS = 2, 16, 128, 4, 256, 2

    root = jax.random.PRNGKey(0)
    k_x, k_params = jax.random.split(root)

    # input activations (B, S, E); causal mask is generated inside the kernel
    x = jax.random.normal(k_x, (B, S, E), jnp.float32)

    layer_keys = jax.random.split(k_params, NUM_LAYERS)
    layer_params = [init_layer_params(k, E, NHEAD, FF) for k in layer_keys]
    norm_params = {"g": jnp.ones((1, E), jnp.float32),
                   "b": jnp.zeros((1, E), jnp.float32)}

    # Hoisted prep: runs once at setup, not per forward call.
    prepped = prepare_decoder_params(layer_params, NHEAD)

    out, aux_loss = transformer_decoder_forward(x, prepped, norm_params, NHEAD)
    out = jax.block_until_ready(out)
    aux_loss = jax.block_until_ready(aux_loss)

    assert out.shape == (B, S, E)
    assert out.dtype == x.dtype
    assert bool(jnp.isfinite(out).all())
    assert float(aux_loss) == 0.0

    ref = reference_forward(x, layer_params, norm_params, NHEAD)
    max_err = float(jnp.max(jnp.abs(out - ref)))
    assert bool(jnp.allclose(out, ref, atol=0.1, rtol=0.1)), (
        f"kernel vs reference mismatch, max abs err = {max_err}")

    print("KERNEL_OK")
</pallas_src>

<mosaic_0001>
module attributes {stable_mosaic.version = 11 : i64} {
  func.func @decoder_layer_kernel(%arg0: i32, %arg1: memref<1x16x128xbf16, #tpu.memory_space<vmem>>, %arg2: memref<128x384xbf16, #tpu.memory_space<vmem>>, %arg3: memref<1x384xf32, #tpu.memory_space<vmem>>, %arg4: memref<128x128xbf16, #tpu.memory_space<vmem>>, %arg5: memref<1x128xf32, #tpu.memory_space<vmem>>, %arg6: memref<1x128xf32, #tpu.memory_space<vmem>>, %arg7: memref<1x128xf32, #tpu.memory_space<vmem>>, %arg8: memref<128x256xbf16, #tpu.memory_space<vmem>>, %arg9: memref<1x256xf32, #tpu.memory_space<vmem>>, %arg10: memref<256x128xbf16, #tpu.memory_space<vmem>>, %arg11: memref<1x128xf32, #tpu.memory_space<vmem>>, %arg12: memref<1x128xf32, #tpu.memory_space<vmem>>, %arg13: memref<1x128xf32, #tpu.memory_space<vmem>>, %arg14: memref<1x128xf32, #tpu.memory_space<vmem>>, %arg15: memref<1x128xf32, #tpu.memory_space<vmem>>, %arg16: memref<1x16x128xbf16, #tpu.memory_space<vmem>>) attributes {dimension_semantics = [#tpu.dimension_semantics<parallel>], iteration_bounds = array<i64: 2>, scalar_prefetch = 0 : i64, scratch_operands = 0 : i64, tpu.core_type = #tpu.core_type<tc>, window_params = [{transform_indices = @transform_0, window_bounds = array<i64: 1, 16, 128>}, {pipeline_mode = #tpu.pipeline_mode<synchronous>, transform_indices = @transform_1, window_bounds = array<i64: 128, 384>}, {pipeline_mode = #tpu.pipeline_mode<synchronous>, transform_indices = @transform_2, window_bounds = array<i64: 1, 384>}, {pipeline_mode = #tpu.pipeline_mode<synchronous>, transform_indices = @transform_3, window_bounds = array<i64: 128, 128>}, {pipeline_mode = #tpu.pipeline_mode<synchronous>, transform_indices = @transform_4, window_bounds = array<i64: 1, 128>}, {pipeline_mode = #tpu.pipeline_mode<synchronous>, transform_indices = @transform_5, window_bounds = array<i64: 1, 128>}, {pipeline_mode = #tpu.pipeline_mode<synchronous>, transform_indices = @transform_6, window_bounds = array<i64: 1, 128>}, {pipeline_mode = #tpu.pipeline_mode<synchronous>, transform_indices = @transform_7, window_bounds = array<i64: 128, 256>}, {pipeline_mode = #tpu.pipeline_mode<synchronous>, transform_indices = @transform_8, window_bounds = array<i64: 1, 256>}, {pipeline_mode = #tpu.pipeline_mode<synchronous>, transform_indices = @transform_9, window_bounds = array<i64: 256, 128>}, {pipeline_mode = #tpu.pipeline_mode<synchronous>, transform_indices = @transform_10, window_bounds = array<i64: 1, 128>}, {pipeline_mode = #tpu.pipeline_mode<synchronous>, transform_indices = @transform_11, window_bounds = array<i64: 1, 128>}, {pipeline_mode = #tpu.pipeline_mode<synchronous>, transform_indices = @transform_12, window_bounds = array<i64: 1, 128>}, {pipeline_mode = #tpu.pipeline_mode<synchronous>, transform_indices = @transform_13, window_bounds = array<i64: 1, 128>}, {pipeline_mode = #tpu.pipeline_mode<synchronous>, transform_indices = @transform_14, window_bounds = array<i64: 1, 128>}, {transform_indices = @transform_15, window_bounds = array<i64: 1, 16, 128>}]} {
    %c0 = arith.constant 0 : index
    %c0_0 = arith.constant 0 : index
    %c0_1 = arith.constant 0 : index
    %0 = vector.load %arg1[%c0, %c0_0, %c0_1] : memref<1x16x128xbf16, #tpu.memory_space<vmem>>, vector<1x16x128xbf16>
    %1 = vector.shape_cast %0 : vector<1x16x128xbf16> to vector<16x128xbf16>
    %c0_2 = arith.constant 0 : index
    %c0_3 = arith.constant 0 : index
    %2 = vector.load %arg2[%c0_2, %c0_3] : memref<128x384xbf16, #tpu.memory_space<vmem>>, vector<128x384xbf16>
    %cst = arith.constant dense<0.000000e+00> : vector<16x384xf32>
    %3 = tpu.matmul %1, %2, %cst {dimension_numbers = #tpu.dot_dimension_numbers<[1], [0], [0], [1], [0, 0, 1, 1], [], []>} : vector<16x128xbf16>, vector<128x384xbf16>, vector<16x384xf32> -> vector<16x384xf32>
    %c0_4 = arith.constant 0 : index
    %c0_5 = arith.constant 0 : index
    %4 = vector.load %arg3[%c0_4, %c0_5] : memref<1x384xf32, #tpu.memory_space<vmem>>, vector<1x384xf32>
    %5 = vector.broadcast %4 : vector<1x384xf32> to vector<16x384xf32>
    %6 = arith.addf %3, %5 : vector<16x384xf32>
    %7 = arith.truncf %6 : vector<16x384xf32> to vector<16x384xbf16>
    %8 = vector.extract_strided_slice %7 {offsets = [0, 0], sizes = [16, 32], strides = [1, 1]} : vector<16x384xbf16> to vector<16x32xbf16>
    %9 = vector.extract_strided_slice %7 {offsets = [0, 32], sizes = [16, 32], strides = [1, 1]} : vector<16x384xbf16> to vector<16x32xbf16>
    %10 = vector.extract_strided_slice %7 {offsets = [0, 64], sizes = [16, 32], strides = [1, 1]} : vector<16x384xbf16> to vector<16x32xbf16>
    %11 = vector.extract_strided_slice %7 {offsets = [0, 96], sizes = [16, 32], strides = [1, 1]} : vector<16x384xbf16> to vector<16x32xbf16>
    %12 = vector.shape_cast %8 : vector<16x32xbf16> to vector<1x16x32xbf16>
    %13 = vector.shape_cast %9 : vector<16x32xbf16> to vector<1x16x32xbf16>
    %14 = vector.shape_cast %10 : vector<16x32xbf16> to vector<1x16x32xbf16>
    %15 = vector.shape_cast %11 : vector<16x32xbf16> to vector<1x16x32xbf16>
    %16 = tpu.concatenate %12, %13, %14, %15 in 0 : vector<1x16x32xbf16>, vector<1x16x32xbf16>, vector<1x16x32xbf16>, vector<1x16x32xbf16> -> vector<4x16x32xbf16>
    %17 = vector.extract_strided_slice %7 {offsets = [0, 128], sizes = [16, 32], strides = [1, 1]} : vector<16x384xbf16> to vector<16x32xbf16>
    %18 = vector.extract_strided_slice %7 {offsets = [0, 160], sizes = [16, 32], strides = [1, 1]} : vector<16x384xbf16> to vector<16x32xbf16>
    %19 = vector.extract_strided_slice %7 {offsets = [0, 192], sizes = [16, 32], strides = [1, 1]} : vector<16x384xbf16> to vector<16x32xbf16>
    %20 = vector.extract_strided_slice %7 {offsets = [0, 224], sizes = [16, 32], strides = [1, 1]} : vector<16x384xbf16> to vector<16x32xbf16>
    %21 = vector.shape_cast %17 : vector<16x32xbf16> to vector<1x16x32xbf16>
    %22 = vector.shape_cast %18 : vector<16x32xbf16> to vector<1x16x32xbf16>
    %23 = vector.shape_cast %19 : vector<16x32xbf16> to vector<1x16x32xbf16>
    %24 = vector.shape_cast %20 : vector<16x32xbf16> to vector<1x16x32xbf16>
    %25 = tpu.concatenate %21, %22, %23, %24 in 0 : vector<1x16x32xbf16>, vector<1x16x32xbf16>, vector<1x16x32xbf16>, vector<1x16x32xbf16> -> vector<4x16x32xbf16>
    %26 = vector.extract_strided_slice %7 {offsets = [0, 256], sizes = [16, 32], strides = [1, 1]} : vector<16x384xbf16> to vector<16x32xbf16>
    %27 = vector.extract_strided_slice %7 {offsets = [0, 288], sizes = [16, 32], strides = [1, 1]} : vector<16x384xbf16> to vector<16x32xbf16>
    %28 = vector.extract_strided_slice %7 {offsets = [0, 320], sizes = [16, 32], strides = [1, 1]} : vector<16x384xbf16> to vector<16x32xbf16>
    %29 = vector.extract_strided_slice %7 {offsets = [0, 352], sizes = [16, 32], strides = [1, 1]} : vector<16x384xbf16> to vector<16x32xbf16>
    %30 = vector.shape_cast %26 : vector<16x32xbf16> to vector<1x16x32xbf16>
    %31 = vector.shape_cast %27 : vector<16x32xbf16> to vector<1x16x32xbf16>
    %32 = vector.shape_cast %28 : vector<16x32xbf16> to vector<1x16x32xbf16>
    %33 = vector.shape_cast %29 : vector<16x32xbf16> to vector<1x16x32xbf16>
    %34 = tpu.concatenate %30, %31, %32, %33 in 0 : vector<1x16x32xbf16>, vector<1x16x32xbf16>, vector<1x16x32xbf16>, vector<1x16x32xbf16> -> vector<4x16x32xbf16>
    "tpu.trace_start"() <{level = 10 : i32, message = "hqd,hkd->hqk"}> : () -> ()
    %cst_6 = arith.constant dense<0.000000e+00> : vector<4x16x16xf32>
    %35 = tpu.matmul %16, %25, %cst_6 {dimension_numbers = #tpu.dot_dimension_numbers<[2], [2], [1], [1], [0, 0, 0, 1, 1, 1], [0], [0]>} : vector<4x16x32xbf16>, vector<4x16x32xbf16>, vector<4x16x16xf32> -> vector<4x16x16xf32>
    "tpu.trace_stop"() : () -> ()
    %36 = tpu.iota {dimensions = array<i32: 0>} : vector<16x16xi32>
    %37 = tpu.iota {dimensions = array<i32: 1>} : vector<16x16xi32>
    %38 = arith.cmpi sgt, %37, %36 : vector<16x16xi32>
    %cst_7 = arith.constant -1.000000e+09 : f32
    %cst_8 = arith.constant 0.000000e+00 : f32
    %39 = vector.broadcast %cst_7 : f32 to vector<16x16xf32>
    %40 = vector.broadcast %cst_8 : f32 to vector<16x16xf32>
    %41 = arith.select %38, %39, %40 : vector<16x16xi1>, vector<16x16xf32>
    %42 = vector.shape_cast %41 : vector<16x16xf32> to vector<1x16x16xf32>
    %43 = vector.broadcast %42 : vector<1x16x16xf32> to vector<4x16x16xf32>
    %44 = arith.addf %35, %43 : vector<4x16x16xf32>
    %cst_9 = arith.constant dense<0xFF800000> : vector<4x16xf32>
    %45 = vector.multi_reduction <maximumf>, %44, %cst_9 [2] : vector<4x16x16xf32> to vector<4x16xf32>
    %46 = vector.shape_cast %45 : vector<4x16xf32> to vector<4x16x1xf32>
    %47 = vector.broadcast %46 : vector<4x16x1xf32> to vector<4x16x16xf32>
    %48 = arith.subf %44, %47 : vector<4x16x16xf32>
    %49 = math.exp %48 : vector<4x16x16xf32>
    %cst_10 = arith.constant dense<0.000000e+00> : vector<4x16xf32>
    %50 = vector.multi_reduction <add>, %49, %cst_10 [2] : vector<4x16x16xf32> to vector<4x16xf32>
    %51 = vector.shape_cast %50 : vector<4x16xf32> to vector<4x16x1xf32>
    %52 = tpu.reciprocal %51 {approx = true} : vector<4x16x1xf32> -> vector<4x16x1xf32>
    %53 = vector.broadcast %52 : vector<4x16x1xf32> to vector<4x16x16xf32>
    %54 = arith.mulf %49, %53 : vector<4x16x16xf32>
    %55 = arith.truncf %54 : vector<4x16x16xf32> to vector<4x16x16xbf16>
    "tpu.trace_start"() <{level = 10 : i32, message = "hqk,hkd->hqd"}> : () -> ()
    %cst_11 = arith.constant dense<0.000000e+00> : vector<4x16x32xf32>
    %56 = tpu.matmul %55, %34, %cst_11 {dimension_numbers = #tpu.dot_dimension_numbers<[2], [1], [1], [2], [0, 0, 0, 1, 1, 2], [0], [0]>} : vector<4x16x16xbf16>, vector<4x16x32xbf16>, vector<4x16x32xf32> -> vector<4x16x32xf32>
    "tpu.trace_stop"() : () -> ()
    %57 = vector.extract_strided_slice %56 {offsets = [0, 0, 0], sizes = [1, 16, 32], strides = [1, 1, 1]} : vector<4x16x32xf32> to vector<1x16x32xf32>
    %58 = vector.shape_cast %57 : vector<1x16x32xf32> to vector<16x32xf32>
    %59 = vector.extract_strided_slice %56 {offsets = [1, 0, 0], sizes = [1, 16, 32], strides = [1, 1, 1]} : vector<4x16x32xf32> to vector<1x16x32xf32>
    %60 = vector.shape_cast %59 : vector<1x16x32xf32> to vector<16x32xf32>
    %61 = vector.extract_strided_slice %56 {offsets = [2, 0, 0], sizes = [1, 16, 32], strides = [1, 1, 1]} : vector<4x16x32xf32> to vector<1x16x32xf32>
    %62 = vector.shape_cast %61 : vector<1x16x32xf32> to vector<16x32xf32>
    %63 = vector.extract_strided_slice %56 {offsets = [3, 0, 0], sizes = [1, 16, 32], strides = [1, 1, 1]} : vector<4x16x32xf32> to vector<1x16x32xf32>
    %64 = vector.shape_cast %63 : vector<1x16x32xf32> to vector<16x32xf32>
    %65 = tpu.concatenate %58, %60, %62, %64 in 1 : vector<16x32xf32>, vector<16x32xf32>, vector<16x32xf32>, vector<16x32xf32> -> vector<16x128xf32>
    %66 = arith.truncf %65 : vector<16x128xf32> to vector<16x128xbf16>
    %c0_12 = arith.constant 0 : index
    %c0_13 = arith.constant 0 : index
    %67 = vector.load %arg4[%c0_12, %c0_13] : memref<128x128xbf16, #tpu.memory_space<vmem>>, vector<128x128xbf16>
    %cst_14 = arith.constant dense<0.000000e+00> : vector<16x128xf32>
    %68 = tpu.matmul %66, %67, %cst_14 {dimension_numbers = #tpu.dot_dimension_numbers<[1], [0], [0], [1], [0, 0, 1, 1], [], []>} : vector<16x128xbf16>, vector<128x128xbf16>, vector<16x128xf32> -> vector<16x128xf32>
    %c0_15 = arith.constant 0 : index
    %c0_16 = arith.constant 0 : index
    %69 = vector.load %arg5[%c0_15, %c0_16] : memref<1x128xf32, #tpu.memory_space<vmem>>, vector<1x128xf32>
    %70 = vector.broadcast %69 : vector<1x128xf32> to vector<16x128xf32>
    %71 = arith.addf %68, %70 : vector<16x128xf32>
    %72 = arith.extf %1 : vector<16x128xbf16> to vector<16x128xf32>
    %73 = arith.addf %72, %71 : vector<16x128xf32>
    %c0_17 = arith.constant 0 : index
    %c0_18 = arith.constant 0 : index
    %74 = vector.load %arg6[%c0_17, %c0_18] : memref<1x128xf32, #tpu.memory_space<vmem>>, vector<1x128xf32>
    %c0_19 = arith.constant 0 : index
    %c0_20 = arith.constant 0 : index
    %75 = vector.load %arg7[%c0_19, %c0_20] : memref<1x128xf32, #tpu.memory_space<vmem>>, vector<1x128xf32>
    %cst_21 = arith.constant dense<0.000000e+00> : vector<16xf32>
    %76 = vector.multi_reduction <add>, %73, %cst_21 [1] : vector<16x128xf32> to vector<16xf32>
    %77 = vector.shape_cast %76 : vector<16xf32> to vector<16x1xf32>
    %cst_22 = arith.constant 1.280000e+02 : f32
    %78 = vector.broadcast %cst_22 : f32 to vector<16x1xf32>
    %79 = arith.divf %77, %78 : vector<16x1xf32>
    %80 = vector.broadcast %79 : vector<16x1xf32> to vector<16x128xf32>
    %81 = arith.subf %73, %80 : vector<16x128xf32>
    %82 = arith.mulf %81, %81 : vector<16x128xf32>
    %cst_23 = arith.constant dense<0.000000e+00> : vector<16xf32>
    %83 = vector.multi_reduction <add>, %82, %cst_23 [1] : vector<16x128xf32> to vector<16xf32>
    %84 = vector.shape_cast %83 : vector<16xf32> to vector<16x1xf32>
    %cst_24 = arith.constant 1.280000e+02 : f32
    %85 = vector.broadcast %cst_24 : f32 to vector<16x1xf32>
    %86 = arith.divf %84, %85 : vector<16x1xf32>
    %87 = vector.broadcast %79 : vector<16x1xf32> to vector<16x128xf32>
    %88 = arith.subf %73, %87 : vector<16x128xf32>
    %cst_25 = arith.constant 9.99999974E-6 : f32
    %89 = vector.broadcast %cst_25 : f32 to vector<16x1xf32>
    %90 = arith.addf %86, %89 : vector<16x1xf32>
    %91 = math.rsqrt %90 : vector<16x1xf32>
    %92 = vector.broadcast %91 : vector<16x1xf32> to vector<16x128xf32>
    %93 = arith.mulf %88, %92 : vector<16x128xf32>
    %94 = vector.broadcast %74 : vector<1x128xf32> to vector<16x128xf32>
    %95 = arith.mulf %93, %94 : vector<16x128xf32>
    %96 = vector.broadcast %75 : vector<1x128xf32> to vector<16x128xf32>
    %97 = arith.addf %95, %96 : vector<16x128xf32>
    %98 = arith.truncf %97 : vector<16x128xf32> to vector<16x128xbf16>
    %c0_26 = arith.constant 0 : index
    %c0_27 = arith.constant 0 : index
    %99 = vector.load %arg8[%c0_26, %c0_27] : memref<128x256xbf16, #tpu.memory_space<vmem>>, vector<128x256xbf16>
    %cst_28 = arith.constant dense<0.000000e+00> : vector<16x256xf32>
    %100 = tpu.matmul %98, %99, %cst_28 {dimension_numbers = #tpu.dot_dimension_numbers<[1], [0], [0], [1], [0, 0, 1, 1], [], []>} : vector<16x128xbf16>, vector<128x256xbf16>, vector<16x256xf32> -> vector<16x256xf32>
    %c0_29 = arith.constant 0 : index
    %c0_30 = arith.constant 0 : index
    %101 = vector.load %arg9[%c0_29, %c0_30] : memref<1x256xf32, #tpu.memory_space<vmem>>, vector<1x256xf32>
    %102 = vector.broadcast %101 : vector<1x256xf32> to vector<16x256xf32>
    %103 = arith.addf %100, %102 : vector<16x256xf32>
    %cst_31 = arith.constant 0.000000e+00 : f32
    %104 = vector.broadcast %cst_31 : f32 to vector<16x256xf32>
    %105 = arith.maximumf %103, %104 : vector<16x256xf32>
    %106 = arith.truncf %105 : vector<16x256xf32> to vector<16x256xbf16>
    %c0_32 = arith.constant 0 : index
    %c0_33 = arith.constant 0 : index
    %107 = vector.load %arg10[%c0_32, %c0_33] : memref<256x128xbf16, #tpu.memory_space<vmem>>, vector<256x128xbf16>
    %cst_34 = arith.constant dense<0.000000e+00> : vector<16x128xf32>
    %108 = tpu.matmul %106, %107, %cst_34 {dimension_numbers = #tpu.dot_dimension_numbers<[1], [0], [0], [1], [0, 0, 1, 1], [], []>} : vector<16x256xbf16>, vector<256x128xbf16>, vector<16x128xf32> -> vector<16x128xf32>
    %c0_35 = arith.constant 0 : index
    %c0_36 = arith.constant 0 : index
    %109 = vector.load %arg11[%c0_35, %c0_36] : memref<1x128xf32, #tpu.memory_space<vmem>>, vector<1x128xf32>
    %110 = vector.broadcast %109 : vector<1x128xf32> to vector<16x128xf32>
    %111 = arith.addf %108, %110 : vector<16x128xf32>
    %112 = arith.addf %97, %111 : vector<16x128xf32>
    %c0_37 = arith.constant 0 : index
    %c0_38 = arith.constant 0 : index
    %113 = vector.load %arg12[%c0_37, %c0_38] : memref<1x128xf32, #tpu.memory_space<vmem>>, vector<1x128xf32>
    %c0_39 = arith.constant 0 : index
    %c0_40 = arith.constant 0 : index
    %114 = vector.load %arg13[%c0_39, %c0_40] : memref<1x128xf32, #tpu.memory_space<vmem>>, vector<1x128xf32>
    %cst_41 = arith.constant dense<0.000000e+00> : vector<16xf32>
    %115 = vector.multi_reduction <add>, %112, %cst_41 [1] : vector<16x128xf32> to vector<16xf32>
    %116 = vector.shape_cast %115 : vector<16xf32> to vector<16x1xf32>
    %cst_42 = arith.constant 1.280000e+02 : f32
    %117 = vector.broadcast %cst_42 : f32 to vector<16x1xf32>
    %118 = arith.divf %116, %117 : vector<16x1xf32>
    %119 = vector.broadcast %118 : vector<16x1xf32> to vector<16x128xf32>
    %120 = arith.subf %112, %119 : vector<16x128xf32>
    %121 = arith.mulf %120, %120 : vector<16x128xf32>
    %cst_43 = arith.constant dense<0.000000e+00> : vector<16xf32>
    %122 = vector.multi_reduction <add>, %121, %cst_43 [1] : vector<16x128xf32> to vector<16xf32>
    %123 = vector.shape_cast %122 : vector<16xf32> to vector<16x1xf32>
    %cst_44 = arith.constant 1.280000e+02 : f32
    %124 = vector.broadcast %cst_44 : f32 to vector<16x1xf32>
    %125 = arith.divf %123, %124 : vector<16x1xf32>
    %126 = vector.broadcast %118 : vector<16x1xf32> to vector<16x128xf32>
    %127 = arith.subf %112, %126 : vector<16x128xf32>
    %cst_45 = arith.constant 9.99999974E-6 : f32
    %128 = vector.broadcast %cst_45 : f32 to vector<16x1xf32>
    %129 = arith.addf %125, %128 : vector<16x1xf32>
    %130 = math.rsqrt %129 : vector<16x1xf32>
    %131 = vector.broadcast %130 : vector<16x1xf32> to vector<16x128xf32>
    %132 = arith.mulf %127, %131 : vector<16x128xf32>
    %133 = vector.broadcast %113 : vector<1x128xf32> to vector<16x128xf32>
    %134 = arith.mulf %132, %133 : vector<16x128xf32>
    %135 = vector.broadcast %114 : vector<1x128xf32> to vector<16x128xf32>
    %136 = arith.addf %134, %135 : vector<16x128xf32>
    %137 = arith.truncf %136 : vector<16x128xf32> to vector<16x128xbf16>
    %c0_46 = arith.constant 0 : index
    %c0_47 = arith.constant 0 : index
    %c0_48 = arith.constant 0 : index
    %138 = vector.load %arg16[%c0_46, %c0_47, %c0_48] : memref<1x16x128xbf16, #tpu.memory_space<vmem>>, vector<1x16x128xbf16>
    %139 = vector.shape_cast %138 : vector<1x16x128xbf16> to vector<16x128xbf16>
    %140 = vector.shape_cast %137 : vector<16x128xbf16> to vector<1x16x128xbf16>
    tpu.vector_store %arg16[%c0_46, %c0_47, %c0_48], %140 {strides = array<i32>} : memref<1x16x128xbf16, #tpu.memory_space<vmem>>, vector<1x16x128xbf16>,
    return
  }
  func.func @transform_0(%arg0: i32) -> (i32, i32, i32) {
    %c0_i32 = arith.constant 0 : i32
    %c0_i32_0 = arith.constant 0 : i32
    %c0_i32_1 = arith.constant 0 : i32
    return %arg0, %c0_i32, %c0_i32_0 : i32, i32, i32
  }
  func.func @transform_1(%arg0: i32) -> (i32, i32) {
    %c0_i32 = arith.constant 0 : i32
    %c0_i32_0 = arith.constant 0 : i32
    %c0_i32_1 = arith.constant 0 : i32
    return %c0_i32, %c0_i32_0 : i32, i32
  }
  func.func @transform_2(%arg0: i32) -> (i32, i32) {
    %c0_i32 = arith.constant 0 : i32
    %c0_i32_0 = arith.constant 0 : i32
    %c0_i32_1 = arith.constant 0 : i32
    return %c0_i32, %c0_i32_0 : i32, i32
  }
  func.func @transform_3(%arg0: i32) -> (i32, i32) {
    %c0_i32 = arith.constant 0 : i32
    %c0_i32_0 = arith.constant 0 : i32
    %c0_i32_1 = arith.constant 0 : i32
    return %c0_i32, %c0_i32_0 : i32, i32
  }
  func.func @transform_4(%arg0: i32) -> (i32, i32) {
    %c0_i32 = arith.constant 0 : i32
    %c0_i32_0 = arith.constant 0 : i32
    %c0_i32_1 = arith.constant 0 : i32
    return %c0_i32, %c0_i32_0 : i32, i32
  }
  func.func @transform_5(%arg0: i32) -> (i32, i32) {
    %c0_i32 = arith.constant 0 : i32
    %c0_i32_0 = arith.constant 0 : i32
    %c0_i32_1 = arith.constant 0 : i32
    return %c0_i32, %c0_i32_0 : i32, i32
  }
  func.func @transform_6(%arg0: i32) -> (i32, i32) {
    %c0_i32 = arith.constant 0 : i32
    %c0_i32_0 = arith.constant 0 : i32
    %c0_i32_1 = arith.constant 0 : i32
    return %c0_i32, %c0_i32_0 : i32, i32
  }
  func.func @transform_7(%arg0: i32) -> (i32, i32) {
    %c0_i32 = arith.constant 0 : i32
    %c0_i32_0 = arith.constant 0 : i32
    %c0_i32_1 = arith.constant 0 : i32
    return %c0_i32, %c0_i32_0 : i32, i32
  }
  func.func @transform_8(%arg0: i32) -> (i32, i32) {
    %c0_i32 = arith.constant 0 : i32
    %c0_i32_0 = arith.constant 0 : i32
    %c0_i32_1 = arith.constant 0 : i32
    return %c0_i32, %c0_i32_0 : i32, i32
  }
  func.func @transform_9(%arg0: i32) -> (i32, i32) {
    %c0_i32 = arith.constant 0 : i32
    %c0_i32_0 = arith.constant 0 : i32
    %c0_i32_1 = arith.constant 0 : i32
    return %c0_i32, %c0_i32_0 : i32, i32
  }
  func.func @transform_10(%arg0: i32) -> (i32, i32) {
    %c0_i32 = arith.constant 0 : i32
    %c0_i32_0 = arith.constant 0 : i32
    %c0_i32_1 = arith.constant 0 : i32
    return %c0_i32, %c0_i32_0 : i32, i32
  }
  func.func @transform_11(%arg0: i32) -> (i32, i32) {
    %c0_i32 = arith.constant 0 : i32
    %c0_i32_0 = arith.constant 0 : i32
    %c0_i32_1 = arith.constant 0 : i32
    return %c0_i32, %c0_i32_0 : i32, i32
  }
  func.func @transform_12(%arg0: i32) -> (i32, i32) {
    %c0_i32 = arith.constant 0 : i32
    %c0_i32_0 = arith.constant 0 : i32
    %c0_i32_1 = arith.constant 0 : i32
    return %c0_i32, %c0_i32_0 : i32, i32
  }
  func.func @transform_13(%arg0: i32) -> (i32, i32) {
    %c0_i32 = arith.constant 0 : i32
    %c0_i32_0 = arith.constant 0 : i32
    %c0_i32_1 = arith.constant 0 : i32
    return %c0_i32, %c0_i32_0 : i32, i32
  }
  func.func @transform_14(%arg0: i32) -> (i32, i32) {
    %c0_i32 = arith.constant 0 : i32
    %c0_i32_0 = arith.constant 0 : i32
    %c0_i32_1 = arith.constant 0 : i32
    return %c0_i32, %c0_i32_0 : i32, i32
  }
  func.func @transform_15(%arg0: i32) -> (i32, i32, i32) {
    %c0_i32 = arith.constant 0 : i32
    %c0_i32_0 = arith.constant 0 : i32
    %c0_i32_1 = arith.constant 0 : i32
    return %arg0, %c0_i32, %c0_i32_0 : i32, i32, i32
  }
}

</mosaic_0001>

<llo_original>
// kernel: tpu_custom_call.1
$region0: #{tpu_custom_call.1}
  #allocation0 [shape = 'u32[]', space=smem, size = 0x4, offset = 0x4, fixed_abs, tag = 'smem constant byte address 0x4 - core index']
  #allocation1 [shape = 'u32[72,128]{1,0:T(1,128)}', space=vmem, size = 0x9000, scoped, tag = 'internal scratch']
  %s0 = inlined_call_operand.hbm [shape: bf16[2,16,128], index: 0, kind: input, shape index: {}]
  %s1 = inlined_call_operand.hbm [shape: bf16[128,384], index: 1, kind: input, shape index: {}]
  %s2 = inlined_call_operand.hbm [shape: f32[1,384], index: 2, kind: input, shape index: {}]
  %s3 = inlined_call_operand.hbm [shape: bf16[128,128], index: 3, kind: input, shape index: {}]
  %s4 = inlined_call_operand.vmem [shape: f32[1,128], index: 4, kind: input, shape index: {}]
  %s5 = inlined_call_operand.vmem [shape: f32[1,128], index: 5, kind: input, shape index: {}]
  %s6 = inlined_call_operand.vmem [shape: f32[1,128], index: 6, kind: input, shape index: {}]
  %s7 = inlined_call_operand.hbm [shape: bf16[128,256], index: 7, kind: input, shape index: {}]
  %s8 = inlined_call_operand.vmem [shape: f32[1,256], index: 8, kind: input, shape index: {}]
  %s9 = inlined_call_operand.hbm [shape: bf16[256,128], index: 9, kind: input, shape index: {}]
  %s10 = inlined_call_operand.vmem [shape: f32[1,128], index: 10, kind: input, shape index: {}]
  %s11 = inlined_call_operand.vmem [shape: f32[1,128], index: 11, kind: input, shape index: {}]
  %s12 = inlined_call_operand.vmem [shape: f32[1,128], index: 12, kind: input, shape index: {}]
  %s13 = inlined_call_operand.vmem [shape: f32[1,128], index: 13, kind: input, shape index: {}]
  %s14 = inlined_call_operand.vmem [shape: f32[1,128], index: 14, kind: input, shape index: {}]
  %s15 = inlined_call_operand.hbm [shape: bf16[2,16,128], index: 15, kind: output, shape index: {}]
  %s16 = sld [smem:[#allocation0]]
  $region117: #{tpu_custom_call.1} parent=0
    _
  %s18 = ssub.s32 1, %s16
  %s19 = scalar_select 0, %s18, %s16
  $region1: #{tpu_custom_call.1} parent=0
    #allocation2 [shape = 'u8[8192]{0}', space=vmem, size = 0x2000, scoped, tag = 'input window, operand 0']
    #allocation3 [shape = 's32[2]{0}', space=sflag, size = 0x8, scoped, tag = 'scoped memory for tpu_custom_call.1']
    #allocation4 [shape = 's32[2]{0}', space=sflag, size = 0x8, scoped, tag = 'scoped memory for tpu_custom_call.1']
    #allocation5 [shape = 'u8[98304]{0}', space=vmem, size = 0x18000, scoped, tag = 'input window, operand 1, single buffered']
    #allocation6 [shape = 's32[1]{0}', space=sflag, size = 0x4, scoped, tag = 'scoped memory for tpu_custom_call.1']
    #allocation7 [shape = 'u8[1536]{0}', space=vmem, size = 0x800, scoped, tag = 'input window, operand 2, single buffered']
    #allocation8 [shape = 'u8[32768]{0}', space=vmem, size = 0x8000, scoped, tag = 'input window, operand 3, single buffered']
    #allocation9 [shape = 's32[1]{0}', space=sflag, size = 0x4, scoped, tag = 'scoped memory for tpu_custom_call.1']
    #allocation10 [shape = 'u8[65536]{0}', space=vmem, size = 0x10000, scoped, tag = 'input window, operand 7, single buffered']
    #allocation11 [shape = 'u8[65536]{0}', space=vmem, size = 0x10000, scoped, tag = 'input window, operand 9, single buffered']
    #allocation12 [shape = 's32[1]{0}', space=sflag, size = 0x4, scoped, tag = 'scoped memory for tpu_custom_call.1']
    #allocation13 [shape = 'u8[8192]{0}', space=vmem, size = 0x2000, scoped, tag = 'output window, operand 0']
    %20 = vsyncpa [#allocation3], 0
    %s21 = scalar_lea.sflag [#allocation3], 1
    %22 = vsyncpa %s21, 0
    %23 = vsyncpa [#allocation6], 0
    %24 = vsyncpa [#allocation9], 0
    %25 = vsyncpa [#allocation12], 0
    %26 = vsyncpa [#allocation4], 0
    %s27 = scalar_lea.sflag [#allocation4], 1
    %28 = vsyncpa %s27, 0
    loop: start=0, step=1, limit=4
    $region2: #{tpu_custom_call.1} parent=1 // loop_pre_header
      _
    $region3: #{tpu_custom_call.1} parent=1 // loop_header
      %s30 = sphi 0, %s34
      %p31 = scmp.ge.s32.totalorder %s30, 4
      %s40 = sphi 0, %s42
      %s43 = sphi 0, %s40
      %s44 = sphi 0, %s43
      %s60 = sphi 0, %s44
      %s64 = sphi 0, %s64
      %s66 = sphi 0, %s64
      %s67 = sphi 0, %s66
      %s81 = sphi 0, %s67
      %s85 = sphi 0, %s85
      %s87 = sphi 0, %s85
      %s88 = sphi 0, %s87
      %s102 = sphi 0, %s88
      %s106 = sphi 0, %s106
      %s108 = sphi 0, %s106
      %s109 = sphi 0, %s108
      %s123 = sphi 0, %s109
      %s127 = sphi 0, %s127
      %s129 = sphi 0, %s127
      %s130 = sphi 0, %s129
      %s144 = sphi 0, %s130
      %s148 = sphi 0, %s148
      %s150 = sphi 0, %s148
      %s151 = sphi 0, %s150
      %s165 = sphi 0, %s151
      %s169 = sphi 0, %s169
      %s171 = sphi 0, %s169
      %s172 = sphi 0, %s171
      %s186 = sphi 0, %s172
      %s190 = sphi 0, %s190
      %s192 = sphi 0, %s190
      %s193 = sphi 0, %s192
      %s207 = sphi 0, %s193
      %s211 = sphi 0, %s211
      %s213 = sphi 0, %s211
      %s214 = sphi 0, %s213
      %s228 = sphi 0, %s214
      %s232 = sphi 0, %s232
      %s234 = sphi 0, %s232
      %s235 = sphi 0, %s234
      %s249 = sphi 0, %s235
      %s253 = sphi 0, %s253
      %s255 = sphi 0, %s253
      %s256 = sphi 0, %s255
      %s270 = sphi 0, %s256
      %s274 = sphi 0, %s274
      %s276 = sphi 0, %s274
      %s277 = sphi 0, %s276
      %s291 = sphi 0, %s277
      %s295 = sphi 0, %s295
      %s297 = sphi 0, %s295
      %s298 = sphi 0, %s297
      %s312 = sphi 0, %s298
      %s316 = sphi 0, %s316
      %s318 = sphi 0, %s316
      %s319 = sphi 0, %s318
      %s333 = sphi 0, %s319
      %s337 = sphi 0, %s337
      %s339 = sphi 0, %s337
      %s340 = sphi 0, %s339
      %s354 = sphi 0, %s340
      %s360 = sphi 0, %s362
      %s363 = sphi 0, %s360
      %s364 = sphi 0, %s363
      %s380 = sphi 0, %s364
    $region4: #{tpu_custom_call.1} parent=1 // loop_header_branch
      %33 = sbr.rel (%p31) target = $region8
    $region5: #{tpu_custom_call.1} parent=1 // loop_body
      %s35 = ssub.s32 %s30, 1
      %s36 = ssub.s32 %s30, 2
      %s37 = sadd.s32 %s30, 1
      %s38 = ssub.s32 %s30, %s37
      %p39 = scmp.eq.s32.totalorder %s38, 0
      %s41 = sadd.s32 %s40, 1
      %s42 = scalar_select %p39, %s40, %s41
      %p45 = pneg %p39
      %p46 = scmp.eq.s32.totalorder %s30, 1
      %p47 = por %p45, %p46
      %p48 = scmp.ne.s32.totalorder %s40, %s43
      %p49 = scmp.eq.s32.totalorder %s30, 0
      %p50 = por %p48, %p49
      %p51 = scmp.ne.s32.totalorder %s40, %s43
      %p52 = scmp.eq.s32.totalorder %s35, 1
      %p53 = por %p51, %p52
      %p54 = scmp.ne.s32.totalorder %s43, %s44
      %p55 = scmp.eq.s32.totalorder %s35, 0
      %p56 = por %p54, %p55
      %p57 = scmp.ne.s32.totalorder %s43, %s44
      %p58 = scmp.eq.s32.totalorder %s36, 1
      %p59 = por %p57, %p58
      %p61 = scmp.ne.s32.totalorder %s44, %s60
      %p62 = scmp.eq.s32.totalorder %s36, 0
      %p63 = por %p61, %p62
      %s65 = sadd.s32 %s64, 1
      %p68 = scmp.eq.s32.totalorder %s30, 1
      %p69 = scmp.ne.s32.totalorder %s64, %s66
      %p70 = scmp.eq.s32.totalorder %s30, 0
      %p71 = por %p69, %p70
      %p72 = scmp.ne.s32.totalorder %s64, %s66
      %p73 = scmp.eq.s32.totalorder %s35, 1
      %p74 = por %p72, %p73
      %p75 = scmp.ne.s32.totalorder %s66, %s67
      %p76 = scmp.eq.s32.totalorder %s35, 0
      %p77 = por %p75, %p76
      %p78 = scmp.ne.s32.totalorder %s66, %s67
      %p79 = scmp.eq.s32.totalorder %s36, 1
      %p80 = por %p78, %p79
      %p82 = scmp.ne.s32.totalorder %s67, %s81
      %p83 = scmp.eq.s32.totalorder %s36, 0
      %p84 = por %p82, %p83
      %s86 = sadd.s32 %s85, 1
      %p89 = scmp.eq.s32.totalorder %s30, 1
      %p90 = scmp.ne.s32.totalorder %s85, %s87
      %p91 = scmp.eq.s32.totalorder %s30, 0
      %p92 = por %p90, %p91
      %p93 = scmp.ne.s32.totalorder %s85, %s87
      %p94 = scmp.eq.s32.totalorder %s35, 1
      %p95 = por %p93, %p94
      %p96 = scmp.ne.s32.totalorder %s87, %s88
      %p97 = scmp.eq.s32.totalorder %s35, 0
      %p98 = por %p96, %p97
      %p99 = scmp.ne.s32.totalorder %s87, %s88
      %p100 = scmp.eq.s32.totalorder %s36, 1
      %p101 = por %p99, %p100
      %p103 = scmp.ne.s32.totalorder %s88, %s102
      %p104 = scmp.eq.s32.totalorder %s36, 0
      %p105 = por %p103, %p104
      %s107 = sadd.s32 %s106, 1
      %p110 = scmp.eq.s32.totalorder %s30, 1
      %p111 = scmp.ne.s32.totalorder %s106, %s108
      %p112 = scmp.eq.s32.totalorder %s30, 0
      %p113 = por %p111, %p112
      %p114 = scmp.ne.s32.totalorder %s106, %s108
      %p115 = scmp.eq.s32.totalorder %s35, 1
      %p116 = por %p114, %p115
      %p117 = scmp.ne.s32.totalorder %s108, %s109
      %p118 = scmp.eq.s32.totalorder %s35, 0
      %p119 = por %p117, %p118
      %p120 = scmp.ne.s32.totalorder %s108, %s109
      %p121 = scmp.eq.s32.totalorder %s36, 1
      %p122 = por %p120, %p121
      %p124 = scmp.ne.s32.totalorder %s109, %s123
      %p125 = scmp.eq.s32.totalorder %s36, 0
      %p126 = por %p124, %p125
      %s128 = sadd.s32 %s127, 1
      %p131 = scmp.eq.s32.totalorder %s30, 1
      %p132 = scmp.ne.s32.totalorder %s127, %s129
      %p133 = scmp.eq.s32.totalorder %s30, 0
      %p134 = por %p132, %p133
      %p135 = scmp.ne.s32.totalorder %s127, %s129
      %p136 = scmp.eq.s32.totalorder %s35, 1
      %p137 = por %p135, %p136
      %p138 = scmp.ne.s32.totalorder %s129, %s130
      %p139 = scmp.eq.s32.totalorder %s35, 0
      %p140 = por %p138, %p139
      %p141 = scmp.ne.s32.totalorder %s129, %s130
      %p142 = scmp.eq.s32.totalorder %s36, 1
      %p143 = por %p141, %p142
      %p145 = scmp.ne.s32.totalorder %s130, %s144
      %p146 = scmp.eq.s32.totalorder %s36, 0
      %p147 = por %p145, %p146
      %s149 = sadd.s32 %s148, 1
      %p152 = scmp.eq.s32.totalorder %s30, 1
      %p153 = scmp.ne.s32.totalorder %s148, %s150
      %p154 = scmp.eq.s32.totalorder %s30, 0
      %p155 = por %p153, %p154
      %p156 = scmp.ne.s32.totalorder %s148, %s150
      %p157 = scmp.eq.s32.totalorder %s35, 1
      %p158 = por %p156, %p157
      %p159 = scmp.ne.s32.totalorder %s150, %s151
      %p160 = scmp.eq.s32.totalorder %s35, 0
      %p161 = por %p159, %p160
      %p162 = scmp.ne.s32.totalorder %s150, %s151
      %p163 = scmp.eq.s32.totalorder %s36, 1
      %p164 = por %p162, %p163
      %p166 = scmp.ne.s32.totalorder %s151, %s165
      %p167 = scmp.eq.s32.totalorder %s36, 0
      %p168 = por %p166, %p167
      %s170 = sadd.s32 %s169, 1
      %p173 = scmp.eq.s32.totalorder %s30, 1
      %p174 = scmp.ne.s32.totalorder %s169, %s171
      %p175 = scmp.eq.s32.totalorder %s30, 0
      %p176 = por %p174, %p175
      %p177 = scmp.ne.s32.totalorder %s169, %s171
      %p178 = scmp.eq.s32.totalorder %s35, 1
      %p179 = por %p177, %p178
      %p180 = scmp.ne.s32.totalorder %s171, %s172
      %p181 = scmp.eq.s32.totalorder %s35, 0
      %p182 = por %p180, %p181
      %p183 = scmp.ne.s32.totalorder %s171, %s172
      %p184 = scmp.eq.s32.totalorder %s36, 1
      %p185 = por %p183, %p184
      %p187 = scmp.ne.s32.totalorder %s172, %s186
      %p188 = scmp.eq.s32.totalorder %s36, 0
      %p189 = por %p187, %p188
      %s191 = sadd.s32 %s190, 1
      %p194 = scmp.eq.s32.totalorder %s30, 1
      %p195 = scmp.ne.s32.totalorder %s190, %s192
      %p196 = scmp.eq.s32.totalorder %s30, 0
      %p197 = por %p195, %p196
      %p198 = scmp.ne.s32.totalorder %s190, %s192
      %p199 = scmp.eq.s32.totalorder %s35, 1
      %p200 = por %p198, %p199
      %p201 = scmp.ne.s32.totalorder %s192, %s193
      %p202 = scmp.eq.s32.totalorder %s35, 0
      %p203 = por %p201, %p202
      %p204 = scmp.ne.s32.totalorder %s192, %s193
      %p205 = scmp.eq.s32.totalorder %s36, 1
      %p206 = por %p204, %p205
      %p208 = scmp.ne.s32.totalorder %s193, %s207
      %p209 = scmp.eq.s32.totalorder %s36, 0
      %p210 = por %p208, %p209
      %s212 = sadd.s32 %s211, 1
      %p215 = scmp.eq.s32.totalorder %s30, 1
      %p216 = scmp.ne.s32.totalorder %s211, %s213
      %p217 = scmp.eq.s32.totalorder %s30, 0
      %p218 = por %p216, %p217
      %p219 = scmp.ne.s32.totalorder %s211, %s213
      %p220 = scmp.eq.s32.totalorder %s35, 1
      %p221 = por %p219, %p220
      %p222 = scmp.ne.s32.totalorder %s213, %s214
      %p223 = scmp.eq.s32.totalorder %s35, 0
      %p224 = por %p222, %p223
      %p225 = scmp.ne.s32.totalorder %s213, %s214
      %p226 = scmp.eq.s32.totalorder %s36, 1
      %p227 = por %p225, %p226
      %p229 = scmp.ne.s32.totalorder %s214, %s228
      %p230 = scmp.eq.s32.totalorder %s36, 0
      %p231 = por %p229, %p230
      %s233 = sadd.s32 %s232, 1
      %p236 = scmp.eq.s32.totalorder %s30, 1
      %p237 = scmp.ne.s32.totalorder %s232, %s234
      %p238 = scmp.eq.s32.totalorder %s30, 0
      %p239 = por %p237, %p238
      %p240 = scmp.ne.s32.totalorder %s232, %s234
      %p241 = scmp.eq.s32.totalorder %s35, 1
      %p242 = por %p240, %p241
      %p243 = scmp.ne.s32.totalorder %s234, %s235
      %p244 = scmp.eq.s32.totalorder %s35, 0
      %p245 = por %p243, %p244
      %p246 = scmp.ne.s32.totalorder %s234, %s235
      %p247 = scmp.eq.s32.totalorder %s36, 1
      %p248 = por %p246, %p247
      %p250 = scmp.ne.s32.totalorder %s235, %s249
      %p251 = scmp.eq.s32.totalorder %s36, 0
      %p252 = por %p250, %p251
      %s254 = sadd.s32 %s253, 1
      %p257 = scmp.eq.s32.totalorder %s30, 1
      %p258 = scmp.ne.s32.totalorder %s253, %s255
      %p259 = scmp.eq.s32.totalorder %s30, 0
      %p260 = por %p258, %p259
      %p261 = scmp.ne.s32.totalorder %s253, %s255
      %p262 = scmp.eq.s32.totalorder %s35, 1
      %p263 = por %p261, %p262
      %p264 = scmp.ne.s32.totalorder %s255, %s256
      %p265 = scmp.eq.s32.totalorder %s35, 0
      %p266 = por %p264, %p265
      %p267 = scmp.ne.s32.totalorder %s255, %s256
      %p268 = scmp.eq.s32.totalorder %s36, 1
      %p269 = por %p267, %p268
      %p271 = scmp.ne.s32.totalorder %s256, %s270
      %p272 = scmp.eq.s32.totalorder %s36, 0
      %p273 = por %p271, %p272
      %s275 = sadd.s32 %s274, 1
      %p278 = scmp.eq.s32.totalorder %s30, 1
      %p279 = scmp.ne.s32.totalorder %s274, %s276
      %p280 = scmp.eq.s32.totalorder %s30, 0
      %p281 = por %p279, %p280
      %p282 = scmp.ne.s32.totalorder %s274, %s276
      %p283 = scmp.eq.s32.totalorder %s35, 1
      %p284 = por %p282, %p283
      %p285 = scmp.ne.s32.totalorder %s276, %s277
      %p286 = scmp.eq.s32.totalorder %s35, 0
      %p287 = por %p285, %p286
      %p288 = scmp.ne.s32.totalorder %s276, %s277
      %p289 = scmp.eq.s32.totalorder %s36, 1
      %p290 = por %p288, %p289
      %p292 = scmp.ne.s32.totalorder %s277, %s291
      %p293 = scmp.eq.s32.totalorder %s36, 0
      %p294 = por %p292, %p293
      %s296 = sadd.s32 %s295, 1
      %p299 = scmp.eq.s32.totalorder %s30, 1
      %p300 = scmp.ne.s32.totalorder %s295, %s297
      %p301 = scmp.eq.s32.totalorder %s30, 0
      %p302 = por %p300, %p301
      %p303 = scmp.ne.s32.totalorder %s295, %s297
      %p304 = scmp.eq.s32.totalorder %s35, 1
      %p305 = por %p303, %p304
      %p306 = scmp.ne.s32.totalorder %s297, %s298
      %p307 = scmp.eq.s32.totalorder %s35, 0
      %p308 = por %p306, %p307
      %p309 = scmp.ne.s32.totalorder %s297, %s298
      %p310 = scmp.eq.s32.totalorder %s36, 1
      %p311 = por %p309, %p310
      %p313 = scmp.ne.s32.totalorder %s298, %s312
      %p314 = scmp.eq.s32.totalorder %s36, 0
      %p315 = por %p313, %p314
      %s317 = sadd.s32 %s316, 1
      %p320 = scmp.eq.s32.totalorder %s30, 1
      %p321 = scmp.ne.s32.totalorder %s316, %s318
      %p322 = scmp.eq.s32.totalorder %s30, 0
      %p323 = por %p321, %p322
      %p324 = scmp.ne.s32.totalorder %s316, %s318
      %p325 = scmp.eq.s32.totalorder %s35, 1
      %p326 = por %p324, %p325
      %p327 = scmp.ne.s32.totalorder %s318, %s319
      %p328 = scmp.eq.s32.totalorder %s35, 0
      %p329 = por %p327, %p328
      %p330 = scmp.ne.s32.totalorder %s318, %s319
      %p331 = scmp.eq.s32.totalorder %s36, 1
      %p332 = por %p330, %p331
      %p334 = scmp.ne.s32.totalorder %s319, %s333
      %p335 = scmp.eq.s32.totalorder %s36, 0
      %p336 = por %p334, %p335
      %s338 = sadd.s32 %s337, 1
      %p341 = scmp.eq.s32.totalorder %s30, 1
      %p342 = scmp.ne.s32.totalorder %s337, %s339
      %p343 = scmp.eq.s32.totalorder %s30, 0
      %p344 = por %p342, %p343
      %p345 = scmp.ne.s32.totalorder %s337, %s339
      %p346 = scmp.eq.s32.totalorder %s35, 1
      %p347 = por %p345, %p346
      %p348 = scmp.ne.s32.totalorder %s339, %s340
      %p349 = scmp.eq.s32.totalorder %s35, 0
      %p350 = por %p348, %p349
      %p351 = scmp.ne.s32.totalorder %s339, %s340
      %p352 = scmp.eq.s32.totalorder %s36, 1
      %p353 = por %p351, %p352
      %p355 = scmp.ne.s32.totalorder %s340, %s354
      %p356 = scmp.eq.s32.totalorder %s36, 0
      %p357 = por %p355, %p356
      %s358 = ssub.s32 %s30, %s37
      %p359 = scmp.eq.s32.totalorder %s358, 0
      %s361 = sadd.s32 %s360, 1
      %s362 = scalar_select %p359, %s360, %s361
      %p365 = pneg %p359
      %p366 = scmp.eq.s32.totalorder %s30, 1
      %p367 = por %p365, %p366
      %p368 = scmp.ne.s32.totalorder %s360, %s363
      %p369 = scmp.eq.s32.totalorder %s30, 0
      %p370 = por %p368, %p369
      %p371 = scmp.ne.s32.totalorder %s360, %s363
      %p372 = scmp.eq.s32.totalorder %s35, 1
      %p373 = por %p371, %p372
      %p374 = scmp.ne.s32.totalorder %s363, %s364
      %p375 = scmp.eq.s32.totalorder %s35, 0
      %p376 = por %p374, %p375
      %p377 = scmp.ne.s32.totalorder %s363, %s364
      %p378 = scmp.eq.s32.totalorder %s36, 1
      %p379 = por %p377, %p378
      %p381 = scmp.ne.s32.totalorder %s364, %s380
      %p382 = scmp.eq.s32.totalorder %s36, 0
      %p383 = por %p381, %p382
      %p384 = scmp.le.s32.totalorder 1, %s30
      %p385 = scmp.lt.s32.totalorder %s30, 3
      %p386 = pnand %p384, %p385
      %p387 = pneg %p386
      // Predicated region
      $region9: #{tpu_custom_call.1} parent=5 // pred_check
        _
      $region10: #{tpu_custom_call.1} parent=5 // pred_check_branch
        %389 = sbr.rel (%p386) target = $region12
      $region11: #{tpu_custom_call.1} parent=5 // pred_region
        %s390 = ssub.s32 %s30, 1
        // Predicated region
        $region13: #{tpu_custom_call.1} parent=11 // pred_check
          %p391 = pneg %p77
        $region14: #{tpu_custom_call.1} parent=11 // pred_check_branch
          %393 = sbr.rel (%p391) target = $region16
        $region15: #{tpu_custom_call.1} parent=11 // pred_region
          %395 = vsyncadd [#allocation6], 0
          %s396 = sshll.u32 %s1, 4
          %s397 = int_to_ptr.hbm [resolvable:$true] %s396
          %s398 = sshll.u32 [#allocation5], 4
          %s399 = int_to_ptr.vmem [resolvable:$true] %s398
          %404 = dma.hbm_to_vmem [thread:$0]  %s397, 3072, %s399, [#allocation6], 192, 192, 12
        $region16: #{tpu_custom_call.1} parent=11 // pred_fallthru
          _
        // Predicated region
        $region17: #{tpu_custom_call.1} parent=11 // pred_check
          %p405 = pneg %p98
        $region18: #{tpu_custom_call.1} parent=11 // pred_check_branch
          %407 = sbr.rel (%p405) target = $region20
        $region19: #{tpu_custom_call.1} parent=11 // pred_region
          %409 = vsyncadd [#allocation6], 0
          %s411 = sshll.u32 %s2, 4
          %s412 = int_to_ptr.hbm [resolvable:$true] %s411
          %s413 = sshll.u32 [#allocation7], 4
          %s414 = int_to_ptr.vmem [resolvable:$true] %s413
          %416 = dma.hbm_to_vmem [thread:$0]  %s412, 48, %s414, [#allocation6]
        $region20: #{tpu_custom_call.1} parent=11 // pred_fallthru
          _
        // Predicated region
        $region21: #{tpu_custom_call.1} parent=11 // pred_check
          %p417 = pneg %p119
        $region22: #{tpu_custom_call.1} parent=11 // pred_check_branch
          %419 = sbr.rel (%p417) target = $region24
        $region23: #{tpu_custom_call.1} parent=11 // pred_region
          %421 = vsyncadd [#allocation9], 0
          %s422 = sshll.u32 %s3, 4
          %s423 = int_to_ptr.hbm [resolvable:$true] %s422
          %s424 = sshll.u32 [#allocation8], 4
          %s425 = int_to_ptr.vmem [resolvable:$true] %s424
          %430 = dma.hbm_to_vmem [thread:$0]  %s423, 1024, %s425, [#allocation9], 64, 64, 4
        $region24: #{tpu_custom_call.1} parent=11 // pred_fallthru
          _
        // Predicated region
        $region25: #{tpu_custom_call.1} parent=11 // pred_check
          %p431 = pneg %p140
        $region26: #{tpu_custom_call.1} parent=11 // pred_check_branch
          %433 = sbr.rel (%p431) target = $region28
        $region27: #{tpu_custom_call.1} parent=11 // pred_region
          _
        $region28: #{tpu_custom_call.1} parent=11 // pred_fallthru
          _
        // Predicated region
        $region29: #{tpu_custom_call.1} parent=11 // pred_check
          %p434 = pneg %p161
        $region30: #{tpu_custom_call.1} parent=11 // pred_check_branch
          %436 = sbr.rel (%p434) target = $region32
        $region31: #{tpu_custom_call.1} parent=11 // pred_region
          _
        $region32: #{tpu_custom_call.1} parent=11 // pred_fallthru
          _
        // Predicated region
        $region33: #{tpu_custom_call.1} parent=11 // pred_check
          %p437 = pneg %p182
        $region34: #{tpu_custom_call.1} parent=11 // pred_check_branch
          %439 = sbr.rel (%p437) target = $region36
        $region35: #{tpu_custom_call.1} parent=11 // pred_region
          _
        $region36: #{tpu_custom_call.1} parent=11 // pred_fallthru
          _
        // Predicated region
        $region37: #{tpu_custom_call.1} parent=11 // pred_check
          %p440 = pneg %p203
        $region38: #{tpu_custom_call.1} parent=11 // pred_check_branch
          %442 = sbr.rel (%p440) target = $region40
        $region39: #{tpu_custom_call.1} parent=11 // pred_region
          %444 = vsyncadd [#allocation9], 0
          %s445 = sshll.u32 %s7, 4
          %s446 = int_to_ptr.hbm [resolvable:$true] %s445
          %s447 = sshll.u32 [#allocation10], 4
          %s448 = int_to_ptr.vmem [resolvable:$true] %s447
          %453 = dma.hbm_to_vmem [thread:$0]  %s446, 2048, %s448, [#allocation9], 128, 128, 8
        $region40: #{tpu_custom_call.1} parent=11 // pred_fallthru
          _
        // Predicated region
        $region41: #{tpu_custom_call.1} parent=11 // pred_check
          %p454 = pneg %p224
        $region42: #{tpu_custom_call.1} parent=11 // pred_check_branch
          %456 = sbr.rel (%p454) target = $region44
        $region43: #{tpu_custom_call.1} parent=11 // pred_region
          _
        $region44: #{tpu_custom_call.1} parent=11 // pred_fallthru
          _
        // Predicated region
        $region45: #{tpu_custom_call.1} parent=11 // pred_check
          %p457 = pneg %p245
        $region46: #{tpu_custom_call.1} parent=11 // pred_check_branch
          %459 = sbr.rel (%p457) target = $region48
        $region47: #{tpu_custom_call.1} parent=11 // pred_region
          %461 = vsyncadd [#allocation12], 0
          %s462 = sshll.u32 %s9, 4
          %s463 = int_to_ptr.hbm [resolvable:$true] %s462
          %s464 = sshll.u32 [#allocation11], 4
          %s465 = int_to_ptr.vmem [resolvable:$true] %s464
          %470 = dma.hbm_to_vmem [thread:$0]  %s463, 2048, %s465, [#allocation12], 64, 64, 4
        $region48: #{tpu_custom_call.1} parent=11 // pred_fallthru
          _
        // Predicated region
        $region49: #{tpu_custom_call.1} parent=11 // pred_check
          %p471 = pneg %p266
        $region50: #{tpu_custom_call.1} parent=11 // pred_check_branch
          %473 = sbr.rel (%p471) target = $region52
        $region51: #{tpu_custom_call.1} parent=11 // pred_region
          _
        $region52: #{tpu_custom_call.1} parent=11 // pred_fallthru
          _
        // Predicated region
        $region53: #{tpu_custom_call.1} parent=11 // pred_check
          %p474 = pneg %p287
        $region54: #{tpu_custom_call.1} parent=11 // pred_check_branch
          %476 = sbr.rel (%p474) target = $region56
        $region55: #{tpu_custom_call.1} parent=11 // pred_region
          _
        $region56: #{tpu_custom_call.1} parent=11 // pred_fallthru
          _
        // Predicated region
        $region57: #{tpu_custom_call.1} parent=11 // pred_check
          %p477 = pneg %p308
        $region58: #{tpu_custom_call.1} parent=11 // pred_check_branch
          %479 = sbr.rel (%p477) target = $region60
        $region59: #{tpu_custom_call.1} parent=11 // pred_region
          _
        $region60: #{tpu_custom_call.1} parent=11 // pred_fallthru
          _
        // Predicated region
        $region61: #{tpu_custom_call.1} parent=11 // pred_check
          %p480 = pneg %p329
        $region62: #{tpu_custom_call.1} parent=11 // pred_check_branch
          %482 = sbr.rel (%p480) target = $region64
        $region63: #{tpu_custom_call.1} parent=11 // pred_region
          _
        $region64: #{tpu_custom_call.1} parent=11 // pred_fallthru
          _
        // Predicated region
        $region65: #{tpu_custom_call.1} parent=11 // pred_check
          %p483 = pneg %p350
        $region66: #{tpu_custom_call.1} parent=11 // pred_check_branch
          %485 = sbr.rel (%p483) target = $region68
        $region67: #{tpu_custom_call.1} parent=11 // pred_region
          _
        $region68: #{tpu_custom_call.1} parent=11 // pred_fallthru
          _
      $region12: #{tpu_custom_call.1} parent=5 // pred_fallthru
        _
      %p486 = scmp.lt.s32.totalorder %s30, 2
      // Predicated region
      $region69: #{tpu_custom_call.1} parent=5 // pred_check
        %p487 = pneg %p486
      $region70: #{tpu_custom_call.1} parent=5 // pred_check_branch
        %489 = sbr.rel (%p487) target = $region72
      $region71: #{tpu_custom_call.1} parent=5 // pred_region
        // Predicated region
        $region73: #{tpu_custom_call.1} parent=71 // pred_check
          %p490 = pneg %p50
        $region74: #{tpu_custom_call.1} parent=71 // pred_check_branch
          %492 = sbr.rel (%p490) target = $region76
        $region75: #{tpu_custom_call.1} parent=71 // pred_region
          %s493 = sand.u32 %s40, 1
          %s494 = scalar_lea.sflag [#allocation3], %s493
          %s495 = sand.u32 %s40, 1
          %s496 = smul.addr %s495, 8
          %s497 = scalar_lea.vmem [#allocation2], %s496
          %499 = vsyncadd %s494, 0
          %s500 = smul.addr %s30, 2
          %s501 = smul.addr %s500, 4
          %s502 = scalar_lea.hbm %s0, %s501
          %s503 = sshll.u32 %s502, 4
          %s504 = int_to_ptr.hbm [resolvable:$true] %s503
          %s505 = sshll.u32 %s497, 4
          %s506 = int_to_ptr.vmem [resolvable:$true] %s505
          %511 = dma.hbm_to_vmem [thread:$0]  %s504, 128, %s506, %s494, 64, 64, 4
        $region76: #{tpu_custom_call.1} parent=71 // pred_fallthru
          _
      $region72: #{tpu_custom_call.1} parent=5 // pred_fallthru
        _
      %p512 = scmp.le.s32.totalorder 1, %s30
      %p513 = scmp.lt.s32.totalorder %s30, 3
      %p514 = pnand %p512, %p513
      %p515 = pneg %p514
      // Predicated region
      $region77: #{tpu_custom_call.1} parent=5 // pred_check
        _
      $region78: #{tpu_custom_call.1} parent=5 // pred_check_branch
        %517 = sbr.rel (%p514) target = $region80
      $region79: #{tpu_custom_call.1} parent=5 // pred_region
        %s518 = ssub.s32 %s30, 1
        %s519 = sand.u32 %s43, 1
        %s520 = scalar_lea.sflag [#allocation3], %s519
        %s521 = sand.u32 %s43, 1
        %s522 = smul.addr %s521, 8
        %s523 = scalar_lea.vmem [#allocation2], %s522
        // Predicated region
        $region81: #{tpu_custom_call.1} parent=79 // pred_check
          %p524 = pneg %p56
        $region82: #{tpu_custom_call.1} parent=79 // pred_check_branch
          %526 = sbr.rel (%p524) target = $region84
        $region83: #{tpu_custom_call.1} parent=79 // pred_region
          %528 = dma.done %s520, 128
        $region84: #{tpu_custom_call.1} parent=79 // pred_fallthru
          _
        // Predicated region
        $region85: #{tpu_custom_call.1} parent=79 // pred_check
          %p529 = pneg %p77
        $region86: #{tpu_custom_call.1} parent=79 // pred_check_branch
          %531 = sbr.rel (%p529) target = $region88
        $region87: #{tpu_custom_call.1} parent=79 // pred_region
          %533 = dma.done [#allocation6], 3072
        $region88: #{tpu_custom_call.1} parent=79 // pred_fallthru
          _
        // Predicated region
        $region89: #{tpu_custom_call.1} parent=79 // pred_check
          %p534 = pneg %p98
        $region90: #{tpu_custom_call.1} parent=79 // pred_check_branch
          %536 = sbr.rel (%p534) target = $region92
        $region91: #{tpu_custom_call.1} parent=79 // pred_region
          %538 = dma.done [#allocation6], 48
        $region92: #{tpu_custom_call.1} parent=79 // pred_fallthru
          _
        // Predicated region
        $region93: #{tpu_custom_call.1} parent=79 // pred_check
          %p539 = pneg %p119
        $region94: #{tpu_custom_call.1} parent=79 // pred_check_branch
          %541 = sbr.rel (%p539) target = $region96
        $region95: #{tpu_custom_call.1} parent=79 // pred_region
          %543 = dma.done [#allocation9], 1024
        $region96: #{tpu_custom_call.1} parent=79 // pred_fallthru
          _
        // Predicated region
        $region97: #{tpu_custom_call.1} parent=79 // pred_check
          %p544 = pneg %p203
        $region98: #{tpu_custom_call.1} parent=79 // pred_check_branch
          %546 = sbr.rel (%p544) target = $region100
        $region99: #{tpu_custom_call.1} parent=79 // pred_region
          %548 = dma.done [#allocation9], 2048
        $region100: #{tpu_custom_call.1} parent=79 // pred_fallthru
          _
        // Predicated region
        $region101: #{tpu_custom_call.1} parent=79 // pred_check
          %p549 = pneg %p245
        $region102: #{tpu_custom_call.1} parent=79 // pred_check_branch
          %551 = sbr.rel (%p549) target = $region104
        $region103: #{tpu_custom_call.1} parent=79 // pred_region
          %553 = dma.done [#allocation12], 2048
        $region104: #{tpu_custom_call.1} parent=79 // pred_fallthru
          _
        %s554 = sand.u32 %s43, 1
        %s555 = scalar_lea.sflag [#allocation3], %s554
        %s556 = sand.u32 %s43, 1
        %s557 = smul.addr %s556, 8
        %s558 = scalar_lea.vmem [#allocation2], %s557
        %p559 = pneg %p56
        %p560 = pneg %p53
        %p561 = pneg %p77
        %p562 = pneg %p74
        %p563 = pneg %p98
        %p564 = pneg %p95
        %p565 = pneg %p119
        %p566 = pneg %p116
        %p567 = pneg %p140
        %p568 = pneg %p137
        %p569 = pneg %p161
        %p570 = pneg %p158
        %p571 = pneg %p182
        %p572 = pneg %p179
        %p573 = pneg %p203
        %p574 = pneg %p200
        %p575 = pneg %p224
        %p576 = pneg %p221
        %p577 = pneg %p245
        %p578 = pneg %p242
        %p579 = pneg %p266
        %p580 = pneg %p263
        %p581 = pneg %p287
        %p582 = pneg %p284
        %p583 = pneg %p308
        %p584 = pneg %p305
        %p585 = pneg %p329
        %p586 = pneg %p326
        %p587 = pneg %p350
        %p588 = pneg %p347
        %p589 = pneg %p376
        %p590 = pneg %p373
        %s591 = sand.u32 %s363, 1
        %s592 = scalar_lea.sflag [#allocation4], %s591
        %s593 = sand.u32 %s363, 1
        %s594 = smul.addr %s593, 8
        %s595 = scalar_lea.vmem [#allocation13], %s594
        %v597 = vld [vmem:[%s523] sm:$0xf]
        %v598 = vld [vmem:[%s523 + $0x4] sm:$0xf]
        %v599 = vld [vmem:[#allocation5] sm:$0xff]
        %v600 = vld [vmem:[#allocation5 + $0x8] sm:$0xf]
        %v601 = vld [vmem:[#allocation5 + $0xc] sm:$0xff]
        %v602 = vld [vmem:[#allocation5 + $0x14] sm:$0xf]
        %v603 = vld [vmem:[#allocation5 + $0x18] sm:$0xff]
        %v604 = vld [vmem:[#allocation5 + $0x20] sm:$0xf]
        %v605 = vld [vmem:[#allocation5 + $0x24] sm:$0xff]
        %v606 = vld [vmem:[#allocation5 + $0x2c] sm:$0xf]
        %v607 = vld [vmem:[#allocation5 + $0x30] sm:$0xff]
        %v608 = vld [vmem:[#allocation5 + $0x38] sm:$0xf]
        %v609 = vld [vmem:[#allocation5 + $0x3c] sm:$0xff]
        %v610 = vld [vmem:[#allocation5 + $0x44] sm:$0xf]
        %v611 = vld [vmem:[#allocation5 + $0x48] sm:$0xff]
        %v612 = vld [vmem:[#allocation5 + $0x50] sm:$0xf]
        %v613 = vld [vmem:[#allocation5 + $0x54] sm:$0xff]
        %v614 = vld [vmem:[#allocation5 + $0x5c] sm:$0xf]
        %v615 = vld [vmem:[#allocation5 + $0x60] sm:$0xff]
        %v616 = vld [vmem:[#allocation5 + $0x68] sm:$0xf]
        %v617 = vld [vmem:[#allocation5 + $0x6c] sm:$0xff]
        %v618 = vld [vmem:[#allocation5 + $0x74] sm:$0xf]
        %v619 = vld [vmem:[#allocation5 + $0x78] sm:$0xff]
        %v620 = vld [vmem:[#allocation5 + $0x80] sm:$0xf]
        %v621 = vld [vmem:[#allocation5 + $0x84] sm:$0xff]
        %v622 = vld [vmem:[#allocation5 + $0x8c] sm:$0xf]
        %v623 = vld [vmem:[#allocation5 + $0x90] sm:$0xff]
        %v624 = vld [vmem:[#allocation5 + $0x98] sm:$0xf]
        %v625 = vld [vmem:[#allocation5 + $0x9c] sm:$0xff]
        %v626 = vld [vmem:[#allocation5 + $0xa4] sm:$0xf]
        %v627 = vld [vmem:[#allocation5 + $0xa8] sm:$0xff]
        %v628 = vld [vmem:[#allocation5 + $0xb0] sm:$0xf]
        %v629 = vld [vmem:[#allocation5 + $0xb4] sm:$0xff]
        %v630 = vld [vmem:[#allocation5 + $0xbc] sm:$0xf]
        %v631 = vld [vmem:[#allocation7] sm:$0x7]
        %v633 = vperm.slane %v631, 0
        %v634 = vperm.slane %v631, 1
        %v635 = vperm.slane %v631, 2
        %v641 = vunpack.c.l.b16 %v597
        %v642 = vunpack.c.l.b16 %v598
        %v643 = vpack.c.b16 %v642, %v641
        %v677 = vunpack.c.l.b16 %v599
        %v678 = vunpack.c.h.b16 %v599
        %v679 = vunpack.c.l.b16 %v600
        %v680 = vunpack.c.l.b16 %v601
        %v681 = vunpack.c.h.b16 %v601
        %v682 = vunpack.c.l.b16 %v602
        %v683 = vunpack.c.l.b16 %v603
        %v684 = vunpack.c.h.b16 %v603
        %v685 = vunpack.c.l.b16 %v604
        %v686 = vunpack.c.l.b16 %v605
        %v687 = vunpack.c.h.b16 %v605
        %v688 = vunpack.c.l.b16 %v606
        %v689 = vunpack.c.l.b16 %v607
        %v690 = vunpack.c.h.b16 %v607
        %v691 = vunpack.c.l.b16 %v608
        %v692 = vunpack.c.l.b16 %v609
        %v693 = vunpack.c.h.b16 %v609
        %v694 = vunpack.c.l.b16 %v610
        %v695 = vunpack.c.l.b16 %v611
        %v696 = vunpack.c.h.b16 %v611
        %v697 = vunpack.c.l.b16 %v612
        %v698 = vunpack.c.l.b16 %v613
        %v699 = vunpack.c.h.b16 %v613
        %v700 = vunpack.c.l.b16 %v614
        %v701 = vunpack.c.l.b16 %v615
        %v702 = vunpack.c.h.b16 %v615
        %v703 = vunpack.c.l.b16 %v616
        %v704 = vunpack.c.l.b16 %v617
        %v705 = vunpack.c.h.b16 %v617
        %v706 = vunpack.c.l.b16 %v618
        %v707 = vunpack.c.l.b16 %v619
        %v708 = vunpack.c.h.b16 %v619
        %v709 = vunpack.c.l.b16 %v620
        %v710 = vunpack.c.l.b16 %v621
        %v711 = vunpack.c.h.b16 %v621
        %v712 = vunpack.c.l.b16 %v622
        %v713 = vunpack.c.l.b16 %v623
        %v714 = vunpack.c.h.b16 %v623
        %v715 = vunpack.c.l.b16 %v624
        %v716 = vunpack.c.l.b16 %v625
        %v717 = vunpack.c.h.b16 %v625
        %v718 = vunpack.c.l.b16 %v626
        %v719 = vunpack.c.l.b16 %v627
        %v720 = vunpack.c.h.b16 %v627
        %v721 = vunpack.c.l.b16 %v628
        %v722 = vunpack.c.l.b16 %v629
        %v723 = vunpack.c.h.b16 %v629
        %v724 = vunpack.c.l.b16 %v630
        %v725 = vpack.c.b16 %v680, %v677
        %v726 = vpack.c.b16 %v681, %v678
        %v727 = vpack.c.b16 %v682, %v679
        %v728 = vpack.c.b16 %v686, %v683
        %v729 = vpack.c.b16 %v687, %v684
        %v730 = vpack.c.b16 %v688, %v685
        %v731 = vpack.c.b16 %v692, %v689
        %v732 = vpack.c.b16 %v693, %v690
        %v733 = vpack.c.b16 %v694, %v691
        %v734 = vpack.c.b16 %v698, %v695
        %v735 = vpack.c.b16 %v699, %v696
        %v736 = vpack.c.b16 %v700, %v697
        %v737 = vpack.c.b16 %v704, %v701
        %v738 = vpack.c.b16 %v705, %v702
        %v739 = vpack.c.b16 %v706, %v703
        %v740 = vpack.c.b16 %v710, %v707
        %v741 = vpack.c.b16 %v711, %v708
        %v742 = vpack.c.b16 %v712, %v709
        %v743 = vpack.c.b16 %v716, %v713
        %v744 = vpack.c.b16 %v717, %v714
        %v745 = vpack.c.b16 %v718, %v715
        %v746 = vpack.c.b16 %v722, %v719
        %v747 = vpack.c.b16 %v723, %v720
        %v748 = vpack.c.b16 %v724, %v721
        %773 = vmatpush.bf16.msra.mxu0 %v746
        %774 = vmatpush.bf16.msra.mxu0 %v743
        %775 = vmatpush.bf16.msra.mxu0 %v740
        %776 = vmatpush.bf16.msra.mxu0 %v737
        %777 = vmatpush.bf16.msra.mxu0 %v734
        %778 = vmatpush.bf16.msra.mxu0 %v731
        %779 = vmatpush.bf16.msra.mxu0 %v728
        %780 = vmatpush.bf16.msra.mxu0 %v725
        %781 = vmatmul.bf16.gmra.mxu0 %v643
        %v782 = vpop.f32.mrf.mxu0
        %v783 = vadd.f32 %v633, %v782
        %v784 = vpop.f32.mrf.mxu0
        %v785 = vadd.f32 %v633, %v784
        %786 = vdwg.mxu0
        %787 = vmatpush.bf16.msra.mxu0 %v747
        %788 = vmatpush.bf16.msra.mxu0 %v744
        %789 = vmatpush.bf16.msra.mxu0 %v741
        %790 = vmatpush.bf16.msra.mxu0 %v738
        %791 = vmatpush.bf16.msra.mxu0 %v735
        %792 = vmatpush.bf16.msra.mxu0 %v732
        %793 = vmatpush.bf16.msra.mxu0 %v729
        %794 = vmatpush.bf16.msra.mxu0 %v726
        %795 = vmatmul.bf16.gmra.mxu0 %v643
        %v796 = vpop.f32.mrf.mxu0
        %v797 = vadd.f32 %v634, %v796
        %v798 = vpop.f32.mrf.mxu0
        %v799 = vadd.f32 %v634, %v798
        %800 = vdwg.mxu0
        %801 = vmatpush.bf16.msra.mxu0 %v748
        %802 = vmatpush.bf16.msra.mxu0 %v745
        %803 = vmatpush.bf16.msra.mxu0 %v742
        %804 = vmatpush.bf16.msra.mxu0 %v739
        %805 = vmatpush.bf16.msra.mxu0 %v736
        %806 = vmatpush.bf16.msra.mxu0 %v733
        %807 = vmatpush.bf16.msra.mxu0 %v730
        %808 = vmatpush.bf16.msra.mxu0 %v727
        %809 = vmatmul.bf16.gmra.mxu0 %v643
        %v810 = vpop.f32.mrf.mxu0
        %v811 = vadd.f32 %v635, %v810
        %v812 = vpop.f32.mrf.mxu0
        %v813 = vadd.f32 %v635, %v812
        %814 = vdwg.mxu0
        %v815 = vpack.c.bf16 %v797, %v783
        %v816 = vpack.c.bf16 %v811, %v811
        %v817 = vpack.c.bf16 %v799, %v785
        %v818 = vpack.c.bf16 %v813, %v813
        %821 = vrot.lane.b32.xlu0 %v815, 96
        %v822 = vpop.permute.xlu0 %821
        %823 = vrot.lane.b32.xlu0 %v817, 96
        %v824 = vpop.permute.xlu0 %823
        %825 = vrot.lane.b32.xlu0 %v815, 64
        %v826 = vpop.permute.xlu0 %825
        %827 = vrot.lane.b32.xlu0 %v817, 64
        %v828 = vpop.permute.xlu0 %827
        %829 = vrot.lane.b32.xlu0 %v815, 32
        %v830 = vpop.permute.xlu0 %829
        %831 = vrot.lane.b32.xlu0 %v817, 32
        %v832 = vpop.permute.xlu0 %831
        %v833 = vrot.slane %v815, 4
        %v834 = vrot.slane %v817, 4
        %v835 = vrot.slane %v822, 4
        %v836 = vrot.slane %v824, 4
        %v837 = vrot.slane %v826, 4
        %v838 = vrot.slane %v828, 4
        %v839 = vrot.slane %v830, 4
        %v840 = vrot.slane %v832, 4
        %843 = vrot.lane.b32.xlu0 %v816, 96
        %v844 = vpop.permute.xlu0 %843
        %845 = vrot.lane.b32.xlu0 %v818, 96
        %v846 = vpop.permute.xlu0 %845
        %847 = vrot.lane.b32.xlu0 %v816, 64
        %v848 = vpop.permute.xlu0 %847
        %849 = vrot.lane.b32.xlu0 %v818, 64
        %v850 = vpop.permute.xlu0 %849
        %851 = vrot.lane.b32.xlu0 %v816, 32
        %v852 = vpop.permute.xlu0 %851
        %853 = vrot.lane.b32.xlu0 %v818, 32
        %v854 = vpop.permute.xlu0 %853
        %v855 = vlaneseq
        %v856 = vshrl.u32 %v855, 7
        %v857 = vadd.s32 %v856, 8
        %v858 = vlaneseq
        %v859 = vand.u32 %v858, 127
        %vm860 = vcmp.gt.s32.totalorder %v859, %v856
        %vm861 = vcmp.gt.s32.totalorder %v859, %v857
        %v862 = vsel %vm860, -1e+09, 0.0
        %v863 = vsel %vm861, -1e+09, 0.0
        %v864 = vunpack.c.l.b16 %v815
        %v865 = vunpack.c.l.b16 %v817
        %v866 = vpack.c.b16 %v865, %v864
        %v867 = vunpack.c.l.b16 %v833
        %v868 = vunpack.c.l.b16 %v834
        %v869 = vpack.c.b16 %v868, %v867
        %vm870 = vcmask 261120
        %v872 = vsel %vm870, %v866, 0
        %v875 = vsel %vm870, %v869, 0
        %877 = vmatpush.bf16.xpose.msra.mxu0 0
        %878 = vmatpush.bf16.xpose.msra.mxu0 0
        %879 = vmatpush.bf16.xpose.msra.mxu0 0
        %880 = vmatpush.bf16.xpose.msra.mxu0 0
        %881 = vmatpush.bf16.xpose.msra.mxu0 0
        %882 = vmatpush.bf16.xpose.msra.mxu0 0
        %883 = vmatpush.bf16.xpose.msra.mxu0 0
        %884 = vmatpush.bf16.xpose.msra.mxu0 %v875
        %885 = vmatmul.bf16.gmra.mxu0 %v872
        %v886 = vpop.f32.mrf.mxu0
        %v887 = vadd.f32 %v862, %v886
        %v888 = vpop.f32.mrf.mxu0
        %v889 = vadd.f32 %v863, %v888
        %890 = vdwg.mxu0
        %v891 = vunpack.c.l.b16 %v822
        %v892 = vunpack.c.l.b16 %v824
        %v893 = vpack.c.b16 %v892, %v891
        %v894 = vunpack.c.l.b16 %v835
        %v895 = vunpack.c.l.b16 %v836
        %v896 = vpack.c.b16 %v895, %v894
        %v898 = vsel %vm870, %v893, 0
        %v901 = vsel %vm870, %v896, 0
        %903 = vmatpush.bf16.xpose.msra.mxu0 0
        %904 = vmatpush.bf16.xpose.msra.mxu0 0
        %905 = vmatpush.bf16.xpose.msra.mxu0 0
        %906 = vmatpush.bf16.xpose.msra.mxu0 0
        %907 = vmatpush.bf16.xpose.msra.mxu0 0
        %908 = vmatpush.bf16.xpose.msra.mxu0 0
        %909 = vmatpush.bf16.xpose.msra.mxu0 0
        %910 = vmatpush.bf16.xpose.msra.mxu0 %v901
        %911 = vmatmul.bf16.gmra.mxu0 %v898
        %v912 = vpop.f32.mrf.mxu0
        %v913 = vadd.f32 %v862, %v912
        %v914 = vpop.f32.mrf.mxu0
        %v915 = vadd.f32 %v863, %v914
        %916 = vdwg.mxu0
        %v917 = vunpack.c.l.b16 %v826
        %v918 = vunpack.c.l.b16 %v828
        %v919 = vpack.c.b16 %v918, %v917
        %v920 = vunpack.c.l.b16 %v837
        %v921 = vunpack.c.l.b16 %v838
        %v922 = vpack.c.b16 %v921, %v920
        %v924 = vsel %vm870, %v919, 0
        %v927 = vsel %vm870, %v922, 0
        %929 = vmatpush.bf16.xpose.msra.mxu0 0
        %930 = vmatpush.bf16.xpose.msra.mxu0 0
        %931 = vmatpush.bf16.xpose.msra.mxu0 0
        %932 = vmatpush.bf16.xpose.msra.mxu0 0
        %933 = vmatpush.bf16.xpose.msra.mxu0 0
        %934 = vmatpush.bf16.xpose.msra.mxu0 0
        %935 = vmatpush.bf16.xpose.msra.mxu0 0
        %936 = vmatpush.bf16.xpose.msra.mxu0 %v927
        %937 = vmatmul.bf16.gmra.mxu0 %v924
        %v938 = vpop.f32.mrf.mxu0
        %v939 = vadd.f32 %v862, %v938
        %v940 = vpop.f32.mrf.mxu0
        %v941 = vadd.f32 %v863, %v940
        %942 = vdwg.mxu0
        %v943 = vunpack.c.l.b16 %v830
        %v944 = vunpack.c.l.b16 %v832
        %v945 = vpack.c.b16 %v944, %v943
        %v946 = vunpack.c.l.b16 %v839
        %v947 = vunpack.c.l.b16 %v840
        %v948 = vpack.c.b16 %v947, %v946
        %v950 = vsel %vm870, %v945, 0
        %v953 = vsel %vm870, %v948, 0
        %955 = vmatpush.bf16.xpose.msra.mxu0 0
        %956 = vmatpush.bf16.xpose.msra.mxu0 0
        %957 = vmatpush.bf16.xpose.msra.mxu0 0
        %958 = vmatpush.bf16.xpose.msra.mxu0 0
        %959 = vmatpush.bf16.xpose.msra.mxu0 0
        %960 = vmatpush.bf16.xpose.msra.mxu0 0
        %961 = vmatpush.bf16.xpose.msra.mxu0 0
        %962 = vmatpush.bf16.xpose.msra.mxu0 %v953
        %963 = vmatmul.bf16.gmra.mxu0 %v950
        %v964 = vpop.f32.mrf.mxu0
        %v965 = vadd.f32 %v862, %v964
        %v966 = vpop.f32.mrf.mxu0
        %v967 = vadd.f32 %v863, %v966
        %968 = vdwg.mxu0
        %vm969 = vcmask 130048
        %v970 = vsel %vm969, %v887, -inf
        %971 = vmax.xlane.f32.xlu0 %v970
        %v972 = vpop.xlane.xlu0 %971
        %v973 = vsel %vm969, %v889, -inf
        %974 = vmax.xlane.f32.xlu0 %v973
        %v975 = vpop.xlane.xlu0 %974
        %v976 = vsel %vm969, %v913, -inf
        %977 = vmax.xlane.f32.xlu0 %v976
        %v978 = vpop.xlane.xlu0 %977
        %v979 = vsel %vm969, %v915, -inf
        %980 = vmax.xlane.f32.xlu0 %v979
        %v981 = vpop.xlane.xlu0 %980
        %v982 = vsel %vm969, %v939, -inf
        %983 = vmax.xlane.f32.xlu0 %v982
        %v984 = vpop.xlane.xlu0 %983
        %v985 = vsel %vm969, %v941, -inf
        %986 = vmax.xlane.f32.xlu0 %v985
        %v987 = vpop.xlane.xlu0 %986
        %v988 = vsel %vm969, %v965, -inf
        %989 = vmax.xlane.f32.xlu0 %v988
        %v990 = vpop.xlane.xlu0 %989
        %v991 = vsel %vm969, %v967, -inf
        %992 = vmax.xlane.f32.xlu0 %v991
        %v993 = vpop.xlane.xlu0 %992
        %v994 = vsub.f32 %v887, %v972
        %v995 = vsub.f32 %v889, %v975
        %v996 = vsub.f32 %v913, %v978
        %v997 = vsub.f32 %v915, %v981
        %v998 = vsub.f32 %v939, %v984
        %v999 = vsub.f32 %v941, %v987
        %v1000 = vsub.f32 %v965, %v990
        %v1001 = vsub.f32 %v967, %v993
        %v1002 = vmul.f32 %v994, 1.442695
        %v1003 = vpow.pop %v1002
        %v1004 = vmul.f32 %v995, 1.442695
        %v1005 = vpow.pop %v1004
        %v1006 = vmul.f32 %v996, 1.442695
        %v1007 = vpow.pop %v1006
        %v1008 = vmul.f32 %v997, 1.442695
        %v1009 = vpow.pop %v1008
        %v1010 = vmul.f32 %v998, 1.442695
        %v1011 = vpow.pop %v1010
        %v1012 = vmul.f32 %v999, 1.442695
        %v1013 = vpow.pop %v1012
        %v1014 = vmul.f32 %v1000, 1.442695
        %v1015 = vpow.pop %v1014
        %v1016 = vmul.f32 %v1001, 1.442695
        %v1017 = vpow.pop %v1016
        %v1018 = vsel %vm969, %v1003, 0.0
        %1019 = vadd.xlane.f32.xlu0 %v1018
        %v1020 = vpop.xlane.xlu0 %1019
        %v1021 = vsel %vm969, %v1005, 0.0
        %1022 = vadd.xlane.f32.xlu0 %v1021
        %v1023 = vpop.xlane.xlu0 %1022
        %v1024 = vsel %vm969, %v1007, 0.0
        %1025 = vadd.xlane.f32.xlu0 %v1024
        %v1026 = vpop.xlane.xlu0 %1025
        %v1027 = vsel %vm969, %v1009, 0.0
        %1028 = vadd.xlane.f32.xlu0 %v1027
        %v1029 = vpop.xlane.xlu0 %1028
        %v1030 = vsel %vm969, %v1011, 0.0
        %1031 = vadd.xlane.f32.xlu0 %v1030
        %v1032 = vpop.xlane.xlu0 %1031
        %v1033 = vsel %vm969, %v1013, 0.0
        %1034 = vadd.xlane.f32.xlu0 %v1033
        %v1035 = vpop.xlane.xlu0 %1034
        %v1036 = vsel %vm969, %v1015, 0.0
        %1037 = vadd.xlane.f32.xlu0 %v1036
        %v1038 = vpop.xlane.xlu0 %1037
        %v1039 = vsel %vm969, %v1017, 0.0
        %1040 = vadd.xlane.f32.xlu0 %v1039
        %v1041 = vpop.xlane.xlu0 %1040
        %v1042 = vrcp.pop %v1020
        %v1043 = vrcp.pop %v1023
        %v1044 = vrcp.pop %v1026
        %v1045 = vrcp.pop %v1029
        %v1046 = vrcp.pop %v1032
        %v1047 = vrcp.pop %v1035
        %v1048 = vrcp.pop %v1038
        %v1049 = vrcp.pop %v1041
        %v1050 = vmul.f32 %v1003, %v1042
        %v1051 = vmul.f32 %v1005, %v1043
        %v1052 = vmul.f32 %v1007, %v1044
        %v1053 = vmul.f32 %v1009, %v1045
        %v1054 = vmul.f32 %v1011, %v1046
        %v1055 = vmul.f32 %v1013, %v1047
        %v1056 = vmul.f32 %v1015, %v1048
        %v1057 = vmul.f32 %v1017, %v1049
        %v1058 = vpack.c.bf16 %v1050, %v1050
        %v1059 = vpack.c.bf16 %v1051, %v1051
        %v1060 = vpack.c.bf16 %v1052, %v1052
        %v1061 = vpack.c.bf16 %v1053, %v1053
        %v1062 = vpack.c.bf16 %v1054, %v1054
        %v1063 = vpack.c.bf16 %v1055, %v1055
        %v1064 = vpack.c.bf16 %v1056, %v1056
        %v1065 = vpack.c.bf16 %v1057, %v1057
        %v1068 = vunpack.c.l.b16 %v1058
        %v1069 = vunpack.c.l.b16 %v1059
        %v1070 = vpack.c.b16 %v1069, %v1068
        %v1071 = vunpack.c.l.b16 %v816
        %v1072 = vunpack.c.l.b16 %v818
        %v1073 = vpack.c.b16 %v1072, %v1071
        %v1076 = vsel %vm969, %v1070, 0
        %1078 = vmatpush.bf16.msra.mxu0 0
        %1079 = vmatpush.bf16.msra.mxu0 0
        %1080 = vmatpush.bf16.msra.mxu0 0
        %1081 = vmatpush.bf16.msra.mxu0 0
        %1082 = vmatpush.bf16.msra.mxu0 0
        %1083 = vmatpush.bf16.msra.mxu0 0
        %1084 = vmatpush.bf16.msra.mxu0 0
        %1085 = vmatpush.bf16.msra.mxu0 %v1073
        %1086 = vmatmul.bf16.gmra.mxu0 %v1076
        %v1087 = vpop.f32.mrf.mxu0
        %v1088 = vadd.f32 0.0, %v1087
        %v1089 = vpop.f32.mrf.mxu0
        %v1090 = vadd.f32 0.0, %v1089
        %1091 = vdwg.mxu0
        %v1094 = vunpack.c.l.b16 %v1060
        %v1095 = vunpack.c.l.b16 %v1061
        %v1096 = vpack.c.b16 %v1095, %v1094
        %v1097 = vunpack.c.l.b16 %v844
        %v1098 = vunpack.c.l.b16 %v846
        %v1099 = vpack.c.b16 %v1098, %v1097
        %v1102 = vsel %vm969, %v1096, 0
        %1104 = vmatpush.bf16.msra.mxu0 0
        %1105 = vmatpush.bf16.msra.mxu0 0
        %1106 = vmatpush.bf16.msra.mxu0 0
        %1107 = vmatpush.bf16.msra.mxu0 0
        %1108 = vmatpush.bf16.msra.mxu0 0
        %1109 = vmatpush.bf16.msra.mxu0 0
        %1110 = vmatpush.bf16.msra.mxu0 0
        %1111 = vmatpush.bf16.msra.mxu0 %v1099
        %1112 = vmatmul.bf16.gmra.mxu0 %v1102
        %v1113 = vpop.f32.mrf.mxu0
        %v1114 = vadd.f32 0.0, %v1113
        %v1115 = vpop.f32.mrf.mxu0
        %v1116 = vadd.f32 0.0, %v1115
        %1117 = vdwg.mxu0
        %v1120 = vunpack.c.l.b16 %v1062
        %v1121 = vunpack.c.l.b16 %v1063
        %v1122 = vpack.c.b16 %v1121, %v1120
        %v1123 = vunpack.c.l.b16 %v848
        %v1124 = vunpack.c.l.b16 %v850
        %v1125 = vpack.c.b16 %v1124, %v1123
        %v1128 = vsel %vm969, %v1122, 0
        %1130 = vmatpush.bf16.msra.mxu0 0
        %1131 = vmatpush.bf16.msra.mxu0 0
        %1132 = vmatpush.bf16.msra.mxu0 0
        %1133 = vmatpush.bf16.msra.mxu0 0
        %1134 = vmatpush.bf16.msra.mxu0 0
        %1135 = vmatpush.bf16.msra.mxu0 0
        %1136 = vmatpush.bf16.msra.mxu0 0
        %1137 = vmatpush.bf16.msra.mxu0 %v1125
        %1138 = vmatmul.bf16.gmra.mxu0 %v1128
        %v1139 = vpop.f32.mrf.mxu0
        %v1140 = vadd.f32 0.0, %v1139
        %v1141 = vpop.f32.mrf.mxu0
        %v1142 = vadd.f32 0.0, %v1141
        %1143 = vdwg.mxu0
        %v1146 = vunpack.c.l.b16 %v1064
        %v1147 = vunpack.c.l.b16 %v1065
        %v1148 = vpack.c.b16 %v1147, %v1146
        %v1149 = vunpack.c.l.b16 %v852
        %v1150 = vunpack.c.l.b16 %v854
        %v1151 = vpack.c.b16 %v1150, %v1149
        %v1154 = vsel %vm969, %v1148, 0
        %1156 = vmatpush.bf16.msra.mxu0 0
        %1157 = vmatpush.bf16.msra.mxu0 0
        %1158 = vmatpush.bf16.msra.mxu0 0
        %1159 = vmatpush.bf16.msra.mxu0 0
        %1160 = vmatpush.bf16.msra.mxu0 0
        %1161 = vmatpush.bf16.msra.mxu0 0
        %1162 = vmatpush.bf16.msra.mxu0 0
        %1163 = vmatpush.bf16.msra.mxu0 %v1151
        %1164 = vmatmul.bf16.gmra.mxu0 %v1154
        %v1165 = vpop.f32.mrf.mxu0
        %v1166 = vadd.f32 0.0, %v1165
        %v1167 = vpop.f32.mrf.mxu0
        %v1168 = vadd.f32 0.0, %v1167
        %1169 = vdwg.mxu0
        %1172 = vrot.lane.b32.xlu0 %v1114, 32
        %v1173 = vpop.permute.xlu0 %1172
        %1174 = vrot.lane.b32.xlu0 %v1116, 32
        %v1175 = vpop.permute.xlu0 %1174
        %1180 = vrot.lane.b32.xlu0 %v1140, 64
        %v1181 = vpop.permute.xlu0 %1180
        %1182 = vrot.lane.b32.xlu0 %v1142, 64
        %v1183 = vpop.permute.xlu0 %1182
        %1188 = vrot.lane.b32.xlu0 %v1166, 96
        %v1189 = vpop.permute.xlu0 %1188
        %1190 = vrot.lane.b32.xlu0 %v1168, 96
        %v1191 = vpop.permute.xlu0 %1190
        %v1194 = vsel %vm870, %v1088, %v1173
        %v1195 = vsel %vm870, %v1090, %v1175
        %vm1196 = vcmask 523264
        %v1197 = vsel %vm1196, %v1194, %v1181
        %v1198 = vsel %vm1196, %v1195, %v1183
        %vm1199 = vcmask 785408
        %v1200 = vsel %vm1199, %v1197, %v1189
        %v1201 = vsel %vm1199, %v1198, %v1191
        %v1202 = vpack.c.bf16 %v1201, %v1200
        %v1203 = vld [vmem:[#allocation8] sm:$0xf]
        %v1204 = vld [vmem:[#allocation8 + $0x4] sm:$0xf]
        %v1205 = vld [vmem:[#allocation8 + $0x8] sm:$0xf]
        %v1206 = vld [vmem:[#allocation8 + $0xc] sm:$0xf]
        %v1207 = vld [vmem:[#allocation8 + $0x10] sm:$0xf]
        %v1208 = vld [vmem:[#allocation8 + $0x14] sm:$0xf]
        %v1209 = vld [vmem:[#allocation8 + $0x18] sm:$0xf]
        %v1210 = vld [vmem:[#allocation8 + $0x1c] sm:$0xf]
        %v1211 = vld [vmem:[#allocation8 + $0x20] sm:$0xf]
        %v1212 = vld [vmem:[#allocation8 + $0x24] sm:$0xf]
        %v1213 = vld [vmem:[#allocation8 + $0x28] sm:$0xf]
        %v1214 = vld [vmem:[#allocation8 + $0x2c] sm:$0xf]
        %v1215 = vld [vmem:[#allocation8 + $0x30] sm:$0xf]
        %v1216 = vld [vmem:[#allocation8 + $0x34] sm:$0xf]
        %v1217 = vld [vmem:[#allocation8 + $0x38] sm:$0xf]
        %v1218 = vld [vmem:[#allocation8 + $0x3c] sm:$0xf]
        %v1219 = vld [vmem:[%s4] sm:$0x1]
        %v1221 = vperm.slane %v1219, 0
        %v1239 = vunpack.c.l.b16 %v1203
        %v1240 = vunpack.c.l.b16 %v1204
        %v1241 = vunpack.c.l.b16 %v1205
        %v1242 = vunpack.c.l.b16 %v1206
        %v1243 = vunpack.c.l.b16 %v1207
        %v1244 = vunpack.c.l.b16 %v1208
        %v1245 = vunpack.c.l.b16 %v1209
        %v1246 = vunpack.c.l.b16 %v1210
        %v1247 = vunpack.c.l.b16 %v1211
        %v1248 = vunpack.c.l.b16 %v1212
        %v1249 = vunpack.c.l.b16 %v1213
        %v1250 = vunpack.c.l.b16 %v1214
        %v1251 = vunpack.c.l.b16 %v1215
        %v1252 = vunpack.c.l.b16 %v1216
        %v1253 = vunpack.c.l.b16 %v1217
        %v1254 = vunpack.c.l.b16 %v1218
        %v1255 = vpack.c.b16 %v1240, %v1239
        %v1256 = vpack.c.b16 %v1242, %v1241
        %v1257 = vpack.c.b16 %v1244, %v1243
        %v1258 = vpack.c.b16 %v1246, %v1245
        %v1259 = vpack.c.b16 %v1248, %v1247
        %v1260 = vpack.c.b16 %v1250, %v1249
        %v1261 = vpack.c.b16 %v1252, %v1251
        %v1262 = vpack.c.b16 %v1254, %v1253
        %1271 = vmatpush.bf16.msra.mxu0 %v1262
        %1272 = vmatpush.bf16.msra.mxu0 %v1261
        %1273 = vmatpush.bf16.msra.mxu0 %v1260
        %1274 = vmatpush.bf16.msra.mxu0 %v1259
        %1275 = vmatpush.bf16.msra.mxu0 %v1258
        %1276 = vmatpush.bf16.msra.mxu0 %v1257
        %1277 = vmatpush.bf16.msra.mxu0 %v1256
        %1278 = vmatpush.bf16.msra.mxu0 %v1255
        %1279 = vmatmul.bf16.gmra.mxu0 %v1202
        %v1280 = vpop.f32.mrf.mxu0
        %v1281 = vadd.f32 %v1221, %v1280
        %v1282 = vpop.f32.mrf.mxu0
        %v1283 = vadd.f32 %v1221, %v1282
        %1284 = vdwg.mxu0
        %v1285 = vunpack.c.l.bf16 %v597
        %v1286 = vunpack.c.l.bf16 %v598
        %v1287 = vadd.f32 %v1285, %v1281
        %v1288 = vadd.f32 %v1286, %v1283
        %v1289 = vld [vmem:[%s5] sm:$0x1]
        %v1290 = vld [vmem:[%s6] sm:$0x1]
        %1291 = vadd.xlane.f32.xlu0 %v1287
        %v1292 = vpop.xlane.xlu0 %1291
        %1293 = vadd.xlane.f32.xlu0 %v1288
        %v1294 = vpop.xlane.xlu0 %1293
        %v1295 = vrcp.pop 128.0
        %v1296 = vmul.f32 128.0, %v1295
        %v1297 = vsub.f32 1.0, %v1296
        %v1298 = vmul.f32 %v1295, %v1297
        %v1299 = vadd.f32 %v1295, %v1298
        %vm1300 = vweird.f32 %v1295
        %v1301 = vsel %vm1300, %v1295, %v1299
        %v1302 = vmul.f32 %v1292, %v1301
        %v1303 = vmul.f32 %v1294, %v1301
        %v1304 = vsub.f32 %v1287, %v1302
        %v1305 = vsub.f32 %v1288, %v1303
        %v1306 = vmul.f32 %v1304, %v1304
        %v1307 = vmul.f32 %v1305, %v1305
        %1308 = vadd.xlane.f32.xlu0 %v1306
        %v1309 = vpop.xlane.xlu0 %1308
        %1310 = vadd.xlane.f32.xlu0 %v1307
        %v1311 = vpop.xlane.xlu0 %1310
        %v1312 = vmul.f32 %v1309, %v1301
        %v1313 = vmul.f32 %v1311, %v1301
        %v1314 = vadd.f32 %v1312, 1e-05
        %v1315 = vadd.f32 %v1313, 1e-05
        %v1316 = vrsqrt.pop %v1314
        %v1317 = vmul.f32 %v1316, %v1314
        %v1318 = vmul.f32 %v1317, %v1316
        %v1319 = vmul.f32 0.5, %v1318
        %v1320 = vsub.f32 1.5, %v1319
        %v1321 = vmul.f32 %v1316, %v1320
        %vm1322 = vweird.f32 %v1314
        %vm1323 = vweird.f32 %v1316
        %vm1324 = vmor %vm1322, %vm1323
        %v1325 = vsel %vm1324, %v1316, %v1321
        %v1326 = vrsqrt.pop %v1315
        %v1327 = vmul.f32 %v1326, %v1315
        %v1328 = vmul.f32 %v1327, %v1326
        %v1329 = vmul.f32 0.5, %v1328
        %v1330 = vsub.f32 1.5, %v1329
        %v1331 = vmul.f32 %v1326, %v1330
        %vm1332 = vweird.f32 %v1315
        %vm1333 = vweird.f32 %v1326
        %vm1334 = vmor %vm1332, %vm1333
        %v1335 = vsel %vm1334, %v1326, %v1331
        %v1336 = vmul.f32 %v1304, %v1325
        %v1337 = vmul.f32 %v1305, %v1335
        %v1339 = vperm.slane %v1289, 0
        %v1341 = vmul.f32 %v1336, %v1339
        %v1342 = vmul.f32 %v1337, %v1339
        %v1344 = vperm.slane %v1290, 0
        %v1346 = vadd.f32 %v1341, %v1344
        %v1347 = vadd.f32 %v1342, %v1344
        %v1348 = vpack.c.bf16 %v1347, %v1346
        %v1349 = vld [vmem:[#allocation10] sm:$0xff]
        %v1350 = vld [vmem:[#allocation10 + $0x8] sm:$0xff]
        %v1351 = vld [vmem:[#allocation10 + $0x10] sm:$0xff]
        %v1352 = vld [vmem:[#allocation10 + $0x18] sm:$0xff]
        %v1353 = vld [vmem:[#allocation10 + $0x20] sm:$0xff]
        %v1354 = vld [vmem:[#allocation10 + $0x28] sm:$0xff]
        %v1355 = vld [vmem:[#allocation10 + $0x30] sm:$0xff]
        %v1356 = vld [vmem:[#allocation10 + $0x38] sm:$0xff]
        %v1357 = vld [vmem:[#allocation10 + $0x40] sm:$0xff]
        %v1358 = vld [vmem:[#allocation10 + $0x48] sm:$0xff]
        %v1359 = vld [vmem:[#allocation10 + $0x50] sm:$0xff]
        %v1360 = vld [vmem:[#allocation10 + $0x58] sm:$0xff]
        %v1361 = vld [vmem:[#allocation10 + $0x60] sm:$0xff]
        %v1362 = vld [vmem:[#allocation10 + $0x68] sm:$0xff]
        %v1363 = vld [vmem:[#allocation10 + $0x70] sm:$0xff]
        %v1364 = vld [vmem:[#allocation10 + $0x78] sm:$0xff]
        %v1365 = vld [vmem:[%s8] sm:$0x3]
        %v1367 = vperm.slane %v1365, 0
        %v1368 = vperm.slane %v1365, 1
        %v1387 = vunpack.c.l.b16 %v1349
        %v1388 = vunpack.c.h.b16 %v1349
        %v1389 = vunpack.c.l.b16 %v1350
        %v1390 = vunpack.c.h.b16 %v1350
        %v1391 = vunpack.c.l.b16 %v1351
        %v1392 = vunpack.c.h.b16 %v1351
        %v1393 = vunpack.c.l.b16 %v1352
        %v1394 = vunpack.c.h.b16 %v1352
        %v1395 = vunpack.c.l.b16 %v1353
        %v1396 = vunpack.c.h.b16 %v1353
        %v1397 = vunpack.c.l.b16 %v1354
        %v1398 = vunpack.c.h.b16 %v1354
        %v1399 = vunpack.c.l.b16 %v1355
        %v1400 = vunpack.c.h.b16 %v1355
        %v1401 = vunpack.c.l.b16 %v1356
        %v1402 = vunpack.c.h.b16 %v1356
        %v1403 = vunpack.c.l.b16 %v1357
        %v1404 = vunpack.c.h.b16 %v1357
        %v1405 = vunpack.c.l.b16 %v1358
        %v1406 = vunpack.c.h.b16 %v1358
        %v1407 = vunpack.c.l.b16 %v1359
        %v1408 = vunpack.c.h.b16 %v1359
        %v1409 = vunpack.c.l.b16 %v1360
        %v1410 = vunpack.c.h.b16 %v1360
        %v1411 = vunpack.c.l.b16 %v1361
        %v1412 = vunpack.c.h.b16 %v1361
        %v1413 = vunpack.c.l.b16 %v1362
        %v1414 = vunpack.c.h.b16 %v1362
        %v1415 = vunpack.c.l.b16 %v1363
        %v1416 = vunpack.c.h.b16 %v1363
        %v1417 = vunpack.c.l.b16 %v1364
        %v1418 = vunpack.c.h.b16 %v1364
        %v1419 = vpack.c.b16 %v1389, %v1387
        %v1420 = vpack.c.b16 %v1390, %v1388
        %v1421 = vpack.c.b16 %v1393, %v1391
        %v1422 = vpack.c.b16 %v1394, %v1392
        %v1423 = vpack.c.b16 %v1397, %v1395
        %v1424 = vpack.c.b16 %v1398, %v1396
        %v1425 = vpack.c.b16 %v1401, %v1399
        %v1426 = vpack.c.b16 %v1402, %v1400
        %v1427 = vpack.c.b16 %v1405, %v1403
        %v1428 = vpack.c.b16 %v1406, %v1404
        %v1429 = vpack.c.b16 %v1409, %v1407
        %v1430 = vpack.c.b16 %v1410, %v1408
        %v1431 = vpack.c.b16 %v1413, %v1411
        %v1432 = vpack.c.b16 %v1414, %v1412
        %v1433 = vpack.c.b16 %v1417, %v1415
        %v1434 = vpack.c.b16 %v1418, %v1416
        %1451 = vmatpush.bf16.msra.mxu0 %v1433
        %1452 = vmatpush.bf16.msra.mxu0 %v1431
        %1453 = vmatpush.bf16.msra.mxu0 %v1429
        %1454 = vmatpush.bf16.msra.mxu0 %v1427
        %1455 = vmatpush.bf16.msra.mxu0 %v1425
        %1456 = vmatpush.bf16.msra.mxu0 %v1423
        %1457 = vmatpush.bf16.msra.mxu0 %v1421
        %1458 = vmatpush.bf16.msra.mxu0 %v1419
        %1459 = vmatmul.bf16.gmra.mxu0 %v1348
        %v1460 = vpop.f32.mrf.mxu0
        %v1461 = vadd.f32 %v1367, %v1460
        %v1462 = vpop.f32.mrf.mxu0
        %v1463 = vadd.f32 %v1367, %v1462
        %1464 = vdwg.mxu0
        %1465 = vmatpush.bf16.msra.mxu0 %v1434
        %1466 = vmatpush.bf16.msra.mxu0 %v1432
        %1467 = vmatpush.bf16.msra.mxu0 %v1430
        %1468 = vmatpush.bf16.msra.mxu0 %v1428
        %1469 = vmatpush.bf16.msra.mxu0 %v1426
        %1470 = vmatpush.bf16.msra.mxu0 %v1424
        %1471 = vmatpush.bf16.msra.mxu0 %v1422
        %1472 = vmatpush.bf16.msra.mxu0 %v1420
        %1473 = vmatmul.bf16.gmra.mxu0 %v1348
        %v1474 = vpop.f32.mrf.mxu0
        %v1475 = vadd.f32 %v1368, %v1474
        %v1476 = vpop.f32.mrf.mxu0
        %v1477 = vadd.f32 %v1368, %v1476
        %1478 = vdwg.mxu0
        %v1479 = vmax.f32 %v1461, 0.0
        %v1480 = vmax.f32 %v1475, 0.0
        %v1481 = vmax.f32 %v1463, 0.0
        %v1482 = vmax.f32 %v1477, 0.0
        %v1483 = vpack.c.bf16 %v1481, %v1479
        %v1484 = vpack.c.bf16 %v1482, %v1480
        %v1485 = vld [vmem:[#allocation11] sm:$0xf]
        %v1486 = vld [vmem:[#allocation11 + $0x4] sm:$0xf]
        %v1487 = vld [vmem:[#allocation11 + $0x8] sm:$0xf]
        %v1488 = vld [vmem:[#allocation11 + $0xc] sm:$0xf]
        %v1489 = vld [vmem:[#allocation11 + $0x10] sm:$0xf]
        %v1490 = vld [vmem:[#allocation11 + $0x14] sm:$0xf]
        %v1491 = vld [vmem:[#allocation11 + $0x18] sm:$0xf]
        %v1492 = vld [vmem:[#allocation11 + $0x1c] sm:$0xf]
        %v1493 = vld [vmem:[#allocation11 + $0x20] sm:$0xf]
        %v1494 = vld [vmem:[#allocation11 + $0x24] sm:$0xf]
        %v1495 = vld [vmem:[#allocation11 + $0x28] sm:$0xf]
        %v1496 = vld [vmem:[#allocation11 + $0x2c] sm:$0xf]
        %v1497 = vld [vmem:[#allocation11 + $0x30] sm:$0xf]
        %v1498 = vld [vmem:[#allocation11 + $0x34] sm:$0xf]
        %v1499 = vld [vmem:[#allocation11 + $0x38] sm:$0xf]
        %v1500 = vld [vmem:[#allocation11 + $0x3c] sm:$0xf]
        %v1501 = vld [vmem:[#allocation11 + $0x40] sm:$0xf]
        %v1502 = vld [vmem:[#allocation11 + $0x44] sm:$0xf]
        %v1503 = vld [vmem:[#allocation11 + $0x48] sm:$0xf]
        %v1504 = vld [vmem:[#allocation11 + $0x4c] sm:$0xf]
        %v1505 = vld [vmem:[#allocation11 + $0x50] sm:$0xf]
        %v1506 = vld [vmem:[#allocation11 + $0x54] sm:$0xf]
        %v1507 = vld [vmem:[#allocation11 + $0x58] sm:$0xf]
        %v1508 = vld [vmem:[#allocation11 + $0x5c] sm:$0xf]
        %v1509 = vld [vmem:[#allocation11 + $0x60] sm:$0xf]
        %v1510 = vld [vmem:[#allocation11 + $0x64] sm:$0xf]
        %v1511 = vld [vmem:[#allocation11 + $0x68] sm:$0xf]
        %v1512 = vld [vmem:[#allocation11 + $0x6c] sm:$0xf]
        %v1513 = vld [vmem:[#allocation11 + $0x70] sm:$0xf]
        %v1514 = vld [vmem:[#allocation11 + $0x74] sm:$0xf]
        %v1515 = vld [vmem:[#allocation11 + $0x78] sm:$0xf]
        %v1516 = vld [vmem:[#allocation11 + $0x7c] sm:$0xf]
        %v1517 = vld [vmem:[%s10] sm:$0x1]
        %v1519 = vperm.slane %v1517, 0
        %v1553 = vunpack.c.l.b16 %v1485
        %v1554 = vunpack.c.l.b16 %v1486
        %v1555 = vunpack.c.l.b16 %v1487
        %v1556 = vunpack.c.l.b16 %v1488
        %v1557 = vunpack.c.l.b16 %v1489
        %v1558 = vunpack.c.l.b16 %v1490
        %v1559 = vunpack.c.l.b16 %v1491
        %v1560 = vunpack.c.l.b16 %v1492
        %v1561 = vunpack.c.l.b16 %v1493
        %v1562 = vunpack.c.l.b16 %v1494
        %v1563 = vunpack.c.l.b16 %v1495
        %v1564 = vunpack.c.l.b16 %v1496
        %v1565 = vunpack.c.l.b16 %v1497
        %v1566 = vunpack.c.l.b16 %v1498
        %v1567 = vunpack.c.l.b16 %v1499
        %v1568 = vunpack.c.l.b16 %v1500
        %v1569 = vunpack.c.l.b16 %v1501
        %v1570 = vunpack.c.l.b16 %v1502
        %v1571 = vunpack.c.l.b16 %v1503
        %v1572 = vunpack.c.l.b16 %v1504
        %v1573 = vunpack.c.l.b16 %v1505
        %v1574 = vunpack.c.l.b16 %v1506
        %v1575 = vunpack.c.l.b16 %v1507
        %v1576 = vunpack.c.l.b16 %v1508
        %v1577 = vunpack.c.l.b16 %v1509
        %v1578 = vunpack.c.l.b16 %v1510
        %v1579 = vunpack.c.l.b16 %v1511
        %v1580 = vunpack.c.l.b16 %v1512
        %v1581 = vunpack.c.l.b16 %v1513
        %v1582 = vunpack.c.l.b16 %v1514
        %v1583 = vunpack.c.l.b16 %v1515
        %v1584 = vunpack.c.l.b16 %v1516
        %v1585 = vpack.c.b16 %v1554, %v1553
        %v1586 = vpack.c.b16 %v1556, %v1555
        %v1587 = vpack.c.b16 %v1558, %v1557
        %v1588 = vpack.c.b16 %v1560, %v1559
        %v1589 = vpack.c.b16 %v1562, %v1561
        %v1590 = vpack.c.b16 %v1564, %v1563
        %v1591 = vpack.c.b16 %v1566, %v1565
        %v1592 = vpack.c.b16 %v1568, %v1567
        %v1593 = vpack.c.b16 %v1570, %v1569
        %v1594 = vpack.c.b16 %v1572, %v1571
        %v1595 = vpack.c.b16 %v1574, %v1573
        %v1596 = vpack.c.b16 %v1576, %v1575
        %v1597 = vpack.c.b16 %v1578, %v1577
        %v1598 = vpack.c.b16 %v1580, %v1579
        %v1599 = vpack.c.b16 %v1582, %v1581
        %v1600 = vpack.c.b16 %v1584, %v1583
        %1617 = vmatpush.bf16.msra.mxu0 %v1592
        %1618 = vmatpush.bf16.msra.mxu0 %v1591
        %1619 = vmatpush.bf16.msra.mxu0 %v1590
        %1620 = vmatpush.bf16.msra.mxu0 %v1589
        %1621 = vmatpush.bf16.msra.mxu0 %v1588
        %1622 = vmatpush.bf16.msra.mxu0 %v1587
        %1623 = vmatpush.bf16.msra.mxu0 %v1586
        %1624 = vmatpush.bf16.msra.mxu0 %v1585
        %1625 = vmatmul.bf16.gmra.mxu0 %v1483
        %v1626 = vpop.f32.mrf.mxu0
        %v1627 = vadd.f32 %v1519, %v1626
        %v1628 = vpop.f32.mrf.mxu0
        %v1629 = vadd.f32 %v1519, %v1628
        %1630 = vdwg.mxu0
        %1631 = vmatpush.bf16.msra.mxu0 %v1600
        %1632 = vmatpush.bf16.msra.mxu0 %v1599
        %1633 = vmatpush.bf16.msra.mxu0 %v1598
        %1634 = vmatpush.bf16.msra.mxu0 %v1597
        %1635 = vmatpush.bf16.msra.mxu0 %v1596
        %1636 = vmatpush.bf16.msra.mxu0 %v1595
        %1637 = vmatpush.bf16.msra.mxu0 %v1594
        %1638 = vmatpush.bf16.msra.mxu0 %v1593
        %1639 = vmatmul.bf16.gmra.mxu0 %v1484
        %v1640 = vpop.f32.mrf.mxu0
        %v1641 = vadd.f32 %v1627, %v1640
        %v1642 = vpop.f32.mrf.mxu0
        %v1643 = vadd.f32 %v1629, %v1642
        %1644 = vdwg.mxu0
        %v1645 = vadd.f32 %v1346, %v1641
        %v1646 = vadd.f32 %v1347, %v1643
        %v1647 = vld [vmem:[%s11] sm:$0x1]
        %v1648 = vld [vmem:[%s12] sm:$0x1]
        %1649 = vadd.xlane.f32.xlu0 %v1645
        %v1650 = vpop.xlane.xlu0 %1649
        %1651 = vadd.xlane.f32.xlu0 %v1646
        %v1652 = vpop.xlane.xlu0 %1651
        %v1653 = vmul.f32 %v1650, %v1301
        %v1654 = vmul.f32 %v1652, %v1301
        %v1655 = vsub.f32 %v1645, %v1653
        %v1656 = vsub.f32 %v1646, %v1654
        %v1657 = vmul.f32 %v1655, %v1655
        %v1658 = vmul.f32 %v1656, %v1656
        %1659 = vadd.xlane.f32.xlu0 %v1657
        %v1660 = vpop.xlane.xlu0 %1659
        %1661 = vadd.xlane.f32.xlu0 %v1658
        %v1662 = vpop.xlane.xlu0 %1661
        %v1663 = vmul.f32 %v1660, %v1301
        %v1664 = vmul.f32 %v1662, %v1301
        %v1665 = vadd.f32 %v1663, 1e-05
        %v1666 = vadd.f32 %v1664, 1e-05
        %v1667 = vrsqrt.pop %v1665
        %v1668 = vmul.f32 %v1667, %v1665
        %v1669 = vmul.f32 %v1668, %v1667
        %v1670 = vmul.f32 0.5, %v1669
        %v1671 = vsub.f32 1.5, %v1670
        %v1672 = vmul.f32 %v1667, %v1671
        %vm1673 = vweird.f32 %v1665
        %vm1674 = vweird.f32 %v1667
        %vm1675 = vmor %vm1673, %vm1674
        %v1676 = vsel %vm1675, %v1667, %v1672
        %v1677 = vrsqrt.pop %v1666
        %v1678 = vmul.f32 %v1677, %v1666
        %v1679 = vmul.f32 %v1678, %v1677
        %v1680 = vmul.f32 0.5, %v1679
        %v1681 = vsub.f32 1.5, %v1680
        %v1682 = vmul.f32 %v1677, %v1681
        %vm1683 = vweird.f32 %v1666
        %vm1684 = vweird.f32 %v1677
        %vm1685 = vmor %vm1683, %vm1684
        %v1686 = vsel %vm1685, %v1677, %v1682
        %v1687 = vmul.f32 %v1655, %v1676
        %v1688 = vmul.f32 %v1656, %v1686
        %v1690 = vperm.slane %v1647, 0
        %v1692 = vmul.f32 %v1687, %v1690
        %v1693 = vmul.f32 %v1688, %v1690
        %v1695 = vperm.slane %v1648, 0
        %v1697 = vadd.f32 %v1692, %v1695
        %v1698 = vadd.f32 %v1693, %v1695
        %v1699 = vpack.c.bf16 %v1697, %v1697
        %v1700 = vpack.c.bf16 %v1698, %v1698
        %1701 = vst [vmem:[%s595] sm:$0xf] %v1699
        %1702 = vst [vmem:[%s595 + $0x4] sm:$0xf] %v1700
        %s1703 = sand.u32 %s363, 1
        %s1704 = scalar_lea.sflag [#allocation4], %s1703
        %s1705 = sand.u32 %s363, 1
        %s1706 = smul.addr %s1705, 8
        %s1707 = scalar_lea.vmem [#allocation13], %s1706
        // Predicated region
        $region105: #{tpu_custom_call.1} parent=79 // pred_check
          %p1708 = pneg %p373
        $region106: #{tpu_custom_call.1} parent=79 // pred_check_branch
          %1710 = sbr.rel (%p1708) target = $region108
        $region107: #{tpu_custom_call.1} parent=79 // pred_region
          %1712 = vsyncadd %s1704, 0
          %s1713 = smul.addr %s35, 2
          %s1714 = smul.addr %s1713, 4
          %s1715 = scalar_lea.hbm %s15, %s1714
          %s1716 = sshll.u32 %s1707, 4
          %s1717 = int_to_ptr.vmem [resolvable:$true] %s1716
          %s1718 = sshll.u32 %s1715, 4
          %s1719 = int_to_ptr.hbm [resolvable:$true] %s1718
          %1724 = dma.vmem_to_hbm [thread:$0]  %s1717, 128, %s1719, %s1704, 64, 64, 4
        $region108: #{tpu_custom_call.1} parent=79 // pred_fallthru
          _
      $region80: #{tpu_custom_call.1} parent=5 // pred_fallthru
        _
      %p1725 = scmp.le.s32.totalorder 2, %s30
      // Predicated region
      $region109: #{tpu_custom_call.1} parent=5 // pred_check
        %p1726 = pneg %p1725
      $region110: #{tpu_custom_call.1} parent=5 // pred_check_branch
        %1728 = sbr.rel (%p1726) target = $region112
      $region111: #{tpu_custom_call.1} parent=5 // pred_region
        %s1729 = ssub.s32 %s30, 2
        // Predicated region
        $region113: #{tpu_custom_call.1} parent=111 // pred_check
          %p1730 = pneg %p379
        $region114: #{tpu_custom_call.1} parent=111 // pred_check_branch
          %1732 = sbr.rel (%p1730) target = $region116
        $region115: #{tpu_custom_call.1} parent=111 // pred_region
          %s1733 = sand.u32 %s364, 1
          %s1734 = scalar_lea.sflag [#allocation4], %s1733
          %s1735 = sand.u32 %s364, 1
          %s1736 = smul.addr %s1735, 8
          %s1737 = scalar_lea.vmem [#allocation13], %s1736
          %1739 = dma.done %s1734, 128
        $region116: #{tpu_custom_call.1} parent=111 // pred_fallthru
          _
      $region112: #{tpu_custom_call.1} parent=5 // pred_fallthru
        _
    $region6: #{tpu_custom_call.1} parent=1 // loop_footer
      %s34 = sadd.s32 1, %s30
    $region7: #{tpu_custom_call.1} parent=1 // loop_footer_branch
      %29 = sbr.rel target = $region3
    $region8: #{tpu_custom_call.1} parent=1 // loop_exit
      _
    %1740 = vsyncpa [#allocation3], 1
    %s1741 = scalar_lea.sflag [#allocation3], 1
    %1742 = vsyncpa %s1741, 1
    %1743 = vsyncpa [#allocation6], 1
    %1744 = vsyncpa [#allocation9], 1
    %1745 = vsyncpa [#allocation12], 1
    %1746 = vsyncpa [#allocation4], 1
    %s1747 = scalar_lea.sflag [#allocation4], 1
    %1748 = vsyncpa %s1747, 1

</llo_original>
